<compile_context>
chip_gen: v7x
topology: tpu7x:2x2x1
jax: 0.10.0
libtpu: 0.0.40
codegen_flags: <defaults>
</compile_context>

<pallas_src>
import numpy as np
import jax
import jax.numpy as jnp
from jax import lax
from jax.experimental import pallas as pl
from jax.experimental.pallas import tpu as pltpu

# Set to jnp.bfloat16 at realistic sizes on v6e/v7x (f32 accumulate stays).  Kept f32
# here to preserve the PyTorch f32 forward numerics for the tolerance check.
MXU_DTYPE = jnp.float32


def bilstm_kernel(x_ref, wcat_ref, bc_ref, whh_ref, lens_ref, wfc_ref, bfc_ref,
                  out_ref, gin_ref):
    """Fused bidirectional LSTM recurrence + Linear head.

    x_ref    : (T*Bp, 2E)  row t*Bp+b = [x[t,b] | x[T-1-t,b]]  (time-major, batch padded)
    wcat_ref : (2E, 8H)    rows [0:E] feed fwd gate cols from x[t]; rows [E:2E] feed rev
                           gate cols from x[T-1-t].  Columns gate-major, dir-interleaved:
                           [i_f,i_r,f_f,f_r,g_f,g_r,o_f,o_r]; i/f/o cols pre-scaled 0.5.
    bc_ref   : (1, 8H)     folded biases (b_ih + b_hh), same layout/scaling
    whh_ref  : (2H, 8H)    recurrent weights, rows [h_f | h_r], block-zero cross terms
    lens_ref : (Bp, 1)     int32 valid lengths (0 for padded batch rows)
    wfc_ref  : (2H, CP)    fc weights, lane-padded to CP (multiple of 128)
    bfc_ref  : (1, CP)
    out_ref  : (Bp, CP)
    gin_ref  : (T*Bp, 8H)  VMEM scratch for the hoisted input projection ("gin" order)
    """
    TBp, _ = x_ref.shape
    H8 = wcat_ref.shape[1]
    H = H8 // 8
    H2 = 2 * H
    Bp = out_ref.shape[0]
    T = TBp // Bp

    # Hoisted input projection: ONE MXU matmul, biases folded, already in per-step
    # "gin" order (fwd columns from x[t], rev columns from x[T-1-t]) -> no per-step
    # select and a single contiguous load per step inside the recurrence.
    gin_ref[...] = (jnp.dot(x_ref[...].astype(MXU_DTYPE), wcat_ref[...].astype(MXU_DTYPE),
                            preferred_element_type=jnp.float32) + bc_ref[...])

    whh = whh_ref[...].astype(MXU_DTYPE)          # resident across the loop

    # Loop-invariant tiles (hoisted: JAX does not CSE broadcasts inside loops).
    lane8 = lax.broadcasted_iota(jnp.int32, (Bp, H8), 1)
    g_lane = (lane8 >= 4 * H) & (lane8 < 6 * H)   # tanh (g-gate) columns

    lane2 = lax.broadcasted_iota(jnp.int32, (Bp, H2), 1)
    is_fwd = lane2 < H                            # fwd half of the [h_f | h_r] state
    dir_sign = jnp.where(is_fwd, 1, -1)           # keep iff dir_sign * t < lim
    lens = lens_ref[...]                          # (Bp, 1) int32
    lim = jnp.where(is_fwd, lens, lens - (T - 1)) # fwd: t < len ; rev: T-1-t < len

    h0 = jnp.zeros((Bp, H2), jnp.float32)         # [h_fwd | h_rev]
    c0 = jnp.zeros((Bp, H2), jnp.float32)

    def step(t, carry):
        h2, c2 = carry
        row = pl.multiple_of(t * Bp, 8)           # sublane-aligned block start
        gates = gin_ref[pl.ds(row, Bp), :] + jnp.dot(
            h2.astype(MXU_DTYPE), whh, preferred_element_type=jnp.float32)   # (Bp, 8H)

        # Single full-tile tanh; i/f/o columns were pre-scaled by 0.5 in the wrapper,
        # so sigmoid(z) = 0.5*tanh(z/2) + 0.5 -> half the EUP pushes per serial step.
        th = jnp.tanh(gates)
        act = jnp.where(g_lane, th, 0.5 * th + 0.5)

        i_g = act[:, 0:H2]
        f_g = act[:, H2:2 * H2]
        g_g = act[:, 2 * H2:3 * H2]
        o_g = act[:, 3 * H2:4 * H2]

        c_new = f_g * c2 + i_g * g_g
        h_new = o_g * jnp.tanh(c_new)

        # pack_padded_sequence semantics: freeze h,c outside each row's valid range.
        keep = (dir_sign * t) < lim               # (Bp, 2H) bool, one mul+cmp per step
        h2 = jnp.where(keep, h_new, h2)
        c2 = jnp.where(keep, c_new, c2)
        return h2, c2

    h2, _ = lax.fori_loop(0, T, step, (h0, c0), unroll=min(T, 8))

    # h2 is already [h_fwd_last | h_rev_first]; dropout is inference-mode identity.
    out_ref[...] = (jnp.dot(h2.astype(MXU_DTYPE), wfc_ref[...].astype(MXU_DTYPE),
                            preferred_element_type=jnp.float32)
                    + bfc_ref[...]).astype(out_ref.dtype)


def lstm_forward(text, text_len, params):
    """Wrapper: embedding gather + weight re-layout (glue) + Pallas kernel call."""
    emb = jnp.take(params["embedding"], text, axis=0)            # (B, T, E)
    B, T, E = emb.shape
    H = params["whh_f"].shape[0]
    C = params["fc_w"].shape[1]
    Bp = max(8, ((B + 7) // 8) * 8)                              # sublane-aligned batch

    # time-major x paired with its time-reverse -> hoisted projection lands directly
    # in per-step "gin" order (fwd gate cols see x[t], rev gate cols see x[T-1-t]).
    x_tm = jnp.transpose(emb, (1, 0, 2)).astype(jnp.float32)     # (T, B, E)
    x_pair = jnp.concatenate([x_tm, x_tm[::-1]], axis=-1)        # (T, B, 2E)
    x_pair = jnp.pad(x_pair, ((0, 0), (0, Bp - B), (0, 0)))      # pad batch rows
    x_flat = x_pair.reshape(T * Bp, 2 * E)

    def gate_major(wf, wr):
        # per-direction [i,f,g,o] (each H wide) -> [i_f,i_r,f_f,f_r,g_f,g_r,o_f,o_r]
        return jnp.concatenate(
            [w[:, g * H:(g + 1) * H] for g in range(4) for w in (wf, wr)], axis=1)

    zih = jnp.zeros_like(params["wih_f"])
    w_cat = jnp.concatenate([gate_major(params["wih_f"], zih),   # rows seen by x[t]
                             gate_major(zih, params["wih_r"])],  # rows seen by x[T-1-t]
                            axis=0)                              # (2E, 8H)
    b_c = gate_major(params["b_f"], params["b_r"])               # (1, 8H)
    zhh = jnp.zeros_like(params["whh_f"])
    # NOTE: half of whh_c is structural zero; at realistic (MXU-bound) sizes use two
    # dense per-direction h@ (H,4H) matmuls instead of this fused (2H,8H) one.
    whh_c = jnp.concatenate([gate_major(params["whh_f"], zhh),
                             gate_major(zhh, params["whh_r"])], axis=0)   # (2H, 8H)

    # tanh-derived sigmoid: pre-scale sigmoid-gate (i/f/o) columns by 0.5 so the kernel
    # only evaluates tanh (sigmoid(z) = 0.5*tanh(z/2) + 0.5).
    col = jnp.arange(8 * H)
    gate_scale = jnp.where((col >= 4 * H) & (col < 6 * H), 1.0, 0.5)[None, :]
    w_cat = w_cat * gate_scale
    whh_c = whh_c * gate_scale
    b_c = b_c * gate_scale

    # valid lengths for the padded batch (padded rows get 0 -> stay frozen at zero)
    lens_p = jnp.zeros((Bp, 1), jnp.int32).at[:B, 0].set(text_len.astype(jnp.int32))

    # Lane-dense fc output: pad classes up to a multiple of 128, slice after the call.
    CP = max(128, ((C + 127) // 128) * 128)
    wfc_p = jnp.zeros((2 * H, CP), jnp.float32).at[:, :C].set(params["fc_w"])
    bfc_p = jnp.zeros((1, CP), jnp.float32).at[:, :C].set(params["fc_b"])

    # TODO(synk): at realistic batch, add a batch-tile grid axis with
    # dimension_semantics=("parallel",) (v7x 2nd TensorCore) and T-chunk the gin slab
    # (v7x 64 MiB VMEM budget).  Degenerate at the Bp=8 / T=8 demo sizes.
    vmem = pl.BlockSpec(memory_space=pltpu.MemorySpace.VMEM)
    out_p = pl.pallas_call(
        bilstm_kernel,
        out_shape=jax.ShapeDtypeStruct((Bp, CP), jnp.float32),
        in_specs=[vmem] * 7,
        out_specs=vmem,
        scratch_shapes=[pltpu.VMEM((T * Bp, 8 * H), jnp.float32)],
        compiler_params=pltpu.CompilerParams(vmem_limit_bytes=32 * 1024 * 1024),
    )(x_flat, w_cat, b_c, whh_c, lens_p, wfc_p, bfc_p)
    return out_p[:B, :C]


def lstm_ref(text, text_len, params):
    """Pure-JAX reference matching PyTorch packed bidirectional LSTM forward."""
    emb = jnp.take(params["embedding"], text, axis=0)
    B, T, _ = emb.shape
    H = params["whh_f"].shape[0]

    def run_dir(wih, whh, b, reverse):
        h = jnp.zeros((B, H), jnp.float32)
        c = jnp.zeros((B, H), jnp.float32)
        order = range(T - 1, -1, -1) if reverse else range(T)
        for t in order:
            xt = emb[:, t, :]
            gates = xt @ wih + h @ whh + b
            i = jax.nn.sigmoid(gates[:, :H])
            f = jax.nn.sigmoid(gates[:, H:2 * H])
            g = jnp.tanh(gates[:, 2 * H:3 * H])
            o = jax.nn.sigmoid(gates[:, 3 * H:])
            cn = f * c + i * g
            hn = o * jnp.tanh(cn)
            valid = (t < text_len).reshape(B, 1)
            h = jnp.where(valid, hn, h)
            c = jnp.where(valid, cn, c)
        return h

    h_f = run_dir(params["wih_f"], params["whh_f"], params["b_f"], False)
    h_r = run_dir(params["wih_r"], params["whh_r"], params["b_r"], True)
    feat = jnp.concatenate([h_f, h_r], axis=1)
    return feat @ params["fc_w"] + params["fc_b"]


if __name__ == "__main__":
    # Small, deterministic configuration implied by the module.
    V, E, H, C = 50, 16, 32, 4      # vocab, embed_dim, hidden_dim, num_classes
    B, T = 2, 8                     # batch, max seq len
    PAD = 0

    key = jax.random.PRNGKey(0)
    keys = jax.random.split(key, 12)
    scale = 1.0 / np.sqrt(H)

    def u(k, shape):
        return jax.random.uniform(k, shape, jnp.float32, -scale, scale)

    emb_w = jax.random.normal(keys[0], (V, E), jnp.float32) * 0.1
    emb_w = emb_w.at[PAD].set(0.0)  # padding_idx row is zero

    params = {
        "embedding": emb_w,
        # weights stored transposed vs PyTorch ((in, 4H)); gate order [i, f, g, o]
        "wih_f": u(keys[1], (E, 4 * H)),
        "whh_f": u(keys[2], (H, 4 * H)),
        "b_f": u(keys[3], (1, 4 * H)) + u(keys[4], (1, 4 * H)),   # b_ih + b_hh
        "wih_r": u(keys[5], (E, 4 * H)),
        "whh_r": u(keys[6], (H, 4 * H)),
        "b_r": u(keys[7], (1, 4 * H)) + u(keys[8], (1, 4 * H)),
        "fc_w": u(keys[9], (2 * H, C)),
        "fc_b": u(keys[10], (1, C)),
    }

    text = jax.random.randint(keys[11], (B, T), 1, V, dtype=jnp.int32)
    text_len = jnp.array([T, 5], dtype=jnp.int32)
    # zero out tokens beyond each length (padding)
    pad_mask = jnp.arange(T)[None, :] < text_len[:, None]
    text = jnp.where(pad_mask, text, PAD)

    # TODO(synk): nn.Dropout(p=0.5) is treated as inference-mode identity.
    out = lstm_forward(text, text_len, params)
    out = jax.block_until_ready(out)

    ref = lstm_ref(text, text_len, params)
    assert out.shape == (B, C)
    np.testing.assert_allclose(np.asarray(out), np.asarray(ref), rtol=5e-5, atol=5e-5)
    print("KERNEL_OK")
</pallas_src>

<mosaic_0001>
module attributes {stable_mosaic.version = 11 : i64} {
  func.func @bilstm_kernel(%arg0: memref<64x32xf32, #tpu.memory_space<vmem>>, %arg1: memref<32x256xf32, #tpu.memory_space<vmem>>, %arg2: memref<1x256xf32, #tpu.memory_space<vmem>>, %arg3: memref<64x256xf32, #tpu.memory_space<vmem>>, %arg4: memref<8x1xi32, #tpu.memory_space<vmem>>, %arg5: memref<64x128xf32, #tpu.memory_space<vmem>>, %arg6: memref<1x128xf32, #tpu.memory_space<vmem>>, %arg7: memref<8x128xf32, #tpu.memory_space<vmem>>, %arg8: memref<64x256xf32, #tpu.memory_space<vmem>>) attributes {dimension_semantics = [], scalar_prefetch = 0 : i64, scratch_operands = 1 : i64, tpu.core_type = #tpu.core_type<tc>} {
    %c0 = arith.constant 0 : index
    %c0_0 = arith.constant 0 : index
    %0 = vector.load %arg0[%c0, %c0_0] : memref<64x32xf32, #tpu.memory_space<vmem>>, vector<64x32xf32>
    %c0_1 = arith.constant 0 : index
    %c0_2 = arith.constant 0 : index
    %1 = vector.load %arg1[%c0_1, %c0_2] : memref<32x256xf32, #tpu.memory_space<vmem>>, vector<32x256xf32>
    %cst = arith.constant dense<0.000000e+00> : vector<64x256xf32>
    %2 = tpu.matmul %0, %1, %cst {dimension_numbers = #tpu.dot_dimension_numbers<[1], [0], [0], [1], [0, 0, 1, 1], [], []>} : vector<64x32xf32>, vector<32x256xf32>, vector<64x256xf32> -> vector<64x256xf32>
    %c0_3 = arith.constant 0 : index
    %c0_4 = arith.constant 0 : index
    %3 = vector.load %arg2[%c0_3, %c0_4] : memref<1x256xf32, #tpu.memory_space<vmem>>, vector<1x256xf32>
    %4 = vector.broadcast %3 : vector<1x256xf32> to vector<64x256xf32>
    %5 = arith.addf %2, %4 : vector<64x256xf32>
    %c0_5 = arith.constant 0 : index
    %c0_6 = arith.constant 0 : index
    %6 = vector.load %arg8[%c0_5, %c0_6] : memref<64x256xf32, #tpu.memory_space<vmem>>, vector<64x256xf32>
    tpu.vector_store %arg8[%c0_5, %c0_6], %5 {strides = array<i32>} : memref<64x256xf32, #tpu.memory_space<vmem>>, vector<64x256xf32>,
    %c0_7 = arith.constant 0 : index
    %c0_8 = arith.constant 0 : index
    %7 = vector.load %arg3[%c0_7, %c0_8] : memref<64x256xf32, #tpu.memory_space<vmem>>, vector<64x256xf32>
    %8 = tpu.iota {dimensions = array<i32: 1>} : vector<8x256xi32>
    %c128_i32 = arith.constant 128 : i32
    %9 = vector.broadcast %c128_i32 : i32 to vector<8x256xi32>
    %10 = arith.cmpi sge, %8, %9 : vector<8x256xi32>
    %c192_i32 = arith.constant 192 : i32
    %11 = vector.broadcast %c192_i32 : i32 to vector<8x256xi32>
    %12 = arith.cmpi slt, %8, %11 : vector<8x256xi32>
    %13 = arith.andi %10, %12 : vector<8x256xi1>
    %14 = tpu.iota {dimensions = array<i32: 1>} : vector<8x64xi32>
    %c32_i32 = arith.constant 32 : i32
    %15 = vector.broadcast %c32_i32 : i32 to vector<8x64xi32>
    %16 = arith.cmpi slt, %14, %15 : vector<8x64xi32>
    %c1_i32 = arith.constant 1 : i32
    %c-1_i32 = arith.constant -1 : i32
    %17 = vector.broadcast %c1_i32 : i32 to vector<8x64xi32>
    %18 = vector.broadcast %c-1_i32 : i32 to vector<8x64xi32>
    %19 = arith.select %16, %17, %18 : vector<8x64xi1>, vector<8x64xi32>
    %c0_9 = arith.constant 0 : index
    %c0_10 = arith.constant 0 : index
    %20 = vector.load %arg4[%c0_9, %c0_10] : memref<8x1xi32, #tpu.memory_space<vmem>>, vector<8x1xi32>
    %c7_i32 = arith.constant 7 : i32
    %21 = vector.broadcast %c7_i32 : i32 to vector<8x1xi32>
    %22 = arith.subi %20, %21 : vector<8x1xi32>
    %23 = vector.shape_cast %20 : vector<8x1xi32> to vector<8x1xi32>
    %24 = vector.broadcast %23 : vector<8x1xi32> to vector<8x64xi32>
    %25 = vector.shape_cast %22 : vector<8x1xi32> to vector<8x1xi32>
    %26 = vector.broadcast %25 : vector<8x1xi32> to vector<8x64xi32>
    %27 = arith.select %16, %24, %26 : vector<8x64xi1>, vector<8x64xi32>
    %cst_11 = arith.constant 0.000000e+00 : f32
    %28 = vector.broadcast %cst_11 : f32 to vector<8x64xf32>
    %cst_12 = arith.constant 0.000000e+00 : f32
    %29 = vector.broadcast %cst_12 : f32 to vector<8x64xf32>
    %c0_i32 = arith.constant 0 : i32
    %c8_i32 = arith.constant 8 : i32
    %30 = arith.muli %c0_i32, %c8_i32 : i32
    %31 = tpu.assume_multiple %30, 8 : i32
    %32 = arith.index_cast %31 : i32 to index
    %c0_13 = arith.constant 0 : index
    %33 = vector.load %arg8[%32, %c0_13] : memref<64x256xf32, #tpu.memory_space<vmem>>, vector<8x256xf32>
    %cst_14 = arith.constant dense<0.000000e+00> : vector<8x256xf32>
    %34 = tpu.matmul %28, %7, %cst_14 {dimension_numbers = #tpu.dot_dimension_numbers<[1], [0], [0], [1], [0, 0, 1, 1], [], []>} : vector<8x64xf32>, vector<64x256xf32>, vector<8x256xf32> -> vector<8x256xf32>
    %35 = arith.addf %33, %34 : vector<8x256xf32>
    %36 = math.tanh %35 : vector<8x256xf32>
    %cst_15 = arith.constant 5.000000e-01 : f32
    %37 = vector.broadcast %cst_15 : f32 to vector<8x256xf32>
    %38 = arith.mulf %37, %36 : vector<8x256xf32>
    %cst_16 = arith.constant 5.000000e-01 : f32
    %39 = vector.broadcast %cst_16 : f32 to vector<8x256xf32>
    %40 = arith.addf %38, %39 : vector<8x256xf32>
    %41 = arith.select %13, %36, %40 : vector<8x256xi1>, vector<8x256xf32>
    %42 = vector.extract_strided_slice %41 {offsets = [0, 0], sizes = [8, 64], strides = [1, 1]} : vector<8x256xf32> to vector<8x64xf32>
    %43 = vector.extract_strided_slice %41 {offsets = [0, 64], sizes = [8, 64], strides = [1, 1]} : vector<8x256xf32> to vector<8x64xf32>
    %44 = vector.extract_strided_slice %41 {offsets = [0, 128], sizes = [8, 64], strides = [1, 1]} : vector<8x256xf32> to vector<8x64xf32>
    %45 = vector.extract_strided_slice %41 {offsets = [0, 192], sizes = [8, 64], strides = [1, 1]} : vector<8x256xf32> to vector<8x64xf32>
    %46 = arith.mulf %43, %29 : vector<8x64xf32>
    %47 = arith.mulf %42, %44 : vector<8x64xf32>
    %48 = arith.addf %46, %47 : vector<8x64xf32>
    %49 = math.tanh %48 : vector<8x64xf32>
    %50 = arith.mulf %45, %49 : vector<8x64xf32>
    %51 = vector.broadcast %c0_i32 : i32 to vector<8x64xi32>
    %52 = arith.muli %19, %51 : vector<8x64xi32>
    %53 = arith.cmpi slt, %52, %27 : vector<8x64xi32>
    %54 = arith.select %53, %50, %28 : vector<8x64xi1>, vector<8x64xf32>
    %55 = arith.select %53, %48, %29 : vector<8x64xi1>, vector<8x64xf32>
    %c1_i32_17 = arith.constant 1 : i32
    %c8_i32_18 = arith.constant 8 : i32
    %56 = arith.muli %c1_i32_17, %c8_i32_18 : i32
    %57 = tpu.assume_multiple %56, 8 : i32
    %58 = arith.index_cast %57 : i32 to index
    %c0_19 = arith.constant 0 : index
    %59 = vector.load %arg8[%58, %c0_19] : memref<64x256xf32, #tpu.memory_space<vmem>>, vector<8x256xf32>
    %cst_20 = arith.constant dense<0.000000e+00> : vector<8x256xf32>
    %60 = tpu.matmul %54, %7, %cst_20 {dimension_numbers = #tpu.dot_dimension_numbers<[1], [0], [0], [1], [0, 0, 1, 1], [], []>} : vector<8x64xf32>, vector<64x256xf32>, vector<8x256xf32> -> vector<8x256xf32>
    %61 = arith.addf %59, %60 : vector<8x256xf32>
    %62 = math.tanh %61 : vector<8x256xf32>
    %cst_21 = arith.constant 5.000000e-01 : f32
    %63 = vector.broadcast %cst_21 : f32 to vector<8x256xf32>
    %64 = arith.mulf %63, %62 : vector<8x256xf32>
    %cst_22 = arith.constant 5.000000e-01 : f32
    %65 = vector.broadcast %cst_22 : f32 to vector<8x256xf32>
    %66 = arith.addf %64, %65 : vector<8x256xf32>
    %67 = arith.select %13, %62, %66 : vector<8x256xi1>, vector<8x256xf32>
    %68 = vector.extract_strided_slice %67 {offsets = [0, 0], sizes = [8, 64], strides = [1, 1]} : vector<8x256xf32> to vector<8x64xf32>
    %69 = vector.extract_strided_slice %67 {offsets = [0, 64], sizes = [8, 64], strides = [1, 1]} : vector<8x256xf32> to vector<8x64xf32>
    %70 = vector.extract_strided_slice %67 {offsets = [0, 128], sizes = [8, 64], strides = [1, 1]} : vector<8x256xf32> to vector<8x64xf32>
    %71 = vector.extract_strided_slice %67 {offsets = [0, 192], sizes = [8, 64], strides = [1, 1]} : vector<8x256xf32> to vector<8x64xf32>
    %72 = arith.mulf %69, %55 : vector<8x64xf32>
    %73 = arith.mulf %68, %70 : vector<8x64xf32>
    %74 = arith.addf %72, %73 : vector<8x64xf32>
    %75 = math.tanh %74 : vector<8x64xf32>
    %76 = arith.mulf %71, %75 : vector<8x64xf32>
    %77 = vector.broadcast %c1_i32_17 : i32 to vector<8x64xi32>
    %78 = arith.muli %19, %77 : vector<8x64xi32>
    %79 = arith.cmpi slt, %78, %27 : vector<8x64xi32>
    %80 = arith.select %79, %76, %54 : vector<8x64xi1>, vector<8x64xf32>
    %81 = arith.select %79, %74, %55 : vector<8x64xi1>, vector<8x64xf32>
    %c2_i32 = arith.constant 2 : i32
    %c8_i32_23 = arith.constant 8 : i32
    %82 = arith.muli %c2_i32, %c8_i32_23 : i32
    %83 = tpu.assume_multiple %82, 8 : i32
    %84 = arith.index_cast %83 : i32 to index
    %c0_24 = arith.constant 0 : index
    %85 = vector.load %arg8[%84, %c0_24] : memref<64x256xf32, #tpu.memory_space<vmem>>, vector<8x256xf32>
    %cst_25 = arith.constant dense<0.000000e+00> : vector<8x256xf32>
    %86 = tpu.matmul %80, %7, %cst_25 {dimension_numbers = #tpu.dot_dimension_numbers<[1], [0], [0], [1], [0, 0, 1, 1], [], []>} : vector<8x64xf32>, vector<64x256xf32>, vector<8x256xf32> -> vector<8x256xf32>
    %87 = arith.addf %85, %86 : vector<8x256xf32>
    %88 = math.tanh %87 : vector<8x256xf32>
    %cst_26 = arith.constant 5.000000e-01 : f32
    %89 = vector.broadcast %cst_26 : f32 to vector<8x256xf32>
    %90 = arith.mulf %89, %88 : vector<8x256xf32>
    %cst_27 = arith.constant 5.000000e-01 : f32
    %91 = vector.broadcast %cst_27 : f32 to vector<8x256xf32>
    %92 = arith.addf %90, %91 : vector<8x256xf32>
    %93 = arith.select %13, %88, %92 : vector<8x256xi1>, vector<8x256xf32>
    %94 = vector.extract_strided_slice %93 {offsets = [0, 0], sizes = [8, 64], strides = [1, 1]} : vector<8x256xf32> to vector<8x64xf32>
    %95 = vector.extract_strided_slice %93 {offsets = [0, 64], sizes = [8, 64], strides = [1, 1]} : vector<8x256xf32> to vector<8x64xf32>
    %96 = vector.extract_strided_slice %93 {offsets = [0, 128], sizes = [8, 64], strides = [1, 1]} : vector<8x256xf32> to vector<8x64xf32>
    %97 = vector.extract_strided_slice %93 {offsets = [0, 192], sizes = [8, 64], strides = [1, 1]} : vector<8x256xf32> to vector<8x64xf32>
    %98 = arith.mulf %95, %81 : vector<8x64xf32>
    %99 = arith.mulf %94, %96 : vector<8x64xf32>
    %100 = arith.addf %98, %99 : vector<8x64xf32>
    %101 = math.tanh %100 : vector<8x64xf32>
    %102 = arith.mulf %97, %101 : vector<8x64xf32>
    %103 = vector.broadcast %c2_i32 : i32 to vector<8x64xi32>
    %104 = arith.muli %19, %103 : vector<8x64xi32>
    %105 = arith.cmpi slt, %104, %27 : vector<8x64xi32>
    %106 = arith.select %105, %102, %80 : vector<8x64xi1>, vector<8x64xf32>
    %107 = arith.select %105, %100, %81 : vector<8x64xi1>, vector<8x64xf32>
    %c3_i32 = arith.constant 3 : i32
    %c8_i32_28 = arith.constant 8 : i32
    %108 = arith.muli %c3_i32, %c8_i32_28 : i32
    %109 = tpu.assume_multiple %108, 8 : i32
    %110 = arith.index_cast %109 : i32 to index
    %c0_29 = arith.constant 0 : index
    %111 = vector.load %arg8[%110, %c0_29] : memref<64x256xf32, #tpu.memory_space<vmem>>, vector<8x256xf32>
    %cst_30 = arith.constant dense<0.000000e+00> : vector<8x256xf32>
    %112 = tpu.matmul %106, %7, %cst_30 {dimension_numbers = #tpu.dot_dimension_numbers<[1], [0], [0], [1], [0, 0, 1, 1], [], []>} : vector<8x64xf32>, vector<64x256xf32>, vector<8x256xf32> -> vector<8x256xf32>
    %113 = arith.addf %111, %112 : vector<8x256xf32>
    %114 = math.tanh %113 : vector<8x256xf32>
    %cst_31 = arith.constant 5.000000e-01 : f32
    %115 = vector.broadcast %cst_31 : f32 to vector<8x256xf32>
    %116 = arith.mulf %115, %114 : vector<8x256xf32>
    %cst_32 = arith.constant 5.000000e-01 : f32
    %117 = vector.broadcast %cst_32 : f32 to vector<8x256xf32>
    %118 = arith.addf %116, %117 : vector<8x256xf32>
    %119 = arith.select %13, %114, %118 : vector<8x256xi1>, vector<8x256xf32>
    %120 = vector.extract_strided_slice %119 {offsets = [0, 0], sizes = [8, 64], strides = [1, 1]} : vector<8x256xf32> to vector<8x64xf32>
    %121 = vector.extract_strided_slice %119 {offsets = [0, 64], sizes = [8, 64], strides = [1, 1]} : vector<8x256xf32> to vector<8x64xf32>
    %122 = vector.extract_strided_slice %119 {offsets = [0, 128], sizes = [8, 64], strides = [1, 1]} : vector<8x256xf32> to vector<8x64xf32>
    %123 = vector.extract_strided_slice %119 {offsets = [0, 192], sizes = [8, 64], strides = [1, 1]} : vector<8x256xf32> to vector<8x64xf32>
    %124 = arith.mulf %121, %107 : vector<8x64xf32>
    %125 = arith.mulf %120, %122 : vector<8x64xf32>
    %126 = arith.addf %124, %125 : vector<8x64xf32>
    %127 = math.tanh %126 : vector<8x64xf32>
    %128 = arith.mulf %123, %127 : vector<8x64xf32>
    %129 = vector.broadcast %c3_i32 : i32 to vector<8x64xi32>
    %130 = arith.muli %19, %129 : vector<8x64xi32>
    %131 = arith.cmpi slt, %130, %27 : vector<8x64xi32>
    %132 = arith.select %131, %128, %106 : vector<8x64xi1>, vector<8x64xf32>
    %133 = arith.select %131, %126, %107 : vector<8x64xi1>, vector<8x64xf32>
    %c4_i32 = arith.constant 4 : i32
    %c8_i32_33 = arith.constant 8 : i32
    %134 = arith.muli %c4_i32, %c8_i32_33 : i32
    %135 = tpu.assume_multiple %134, 8 : i32
    %136 = arith.index_cast %135 : i32 to index
    %c0_34 = arith.constant 0 : index
    %137 = vector.load %arg8[%136, %c0_34] : memref<64x256xf32, #tpu.memory_space<vmem>>, vector<8x256xf32>
    %cst_35 = arith.constant dense<0.000000e+00> : vector<8x256xf32>
    %138 = tpu.matmul %132, %7, %cst_35 {dimension_numbers = #tpu.dot_dimension_numbers<[1], [0], [0], [1], [0, 0, 1, 1], [], []>} : vector<8x64xf32>, vector<64x256xf32>, vector<8x256xf32> -> vector<8x256xf32>
    %139 = arith.addf %137, %138 : vector<8x256xf32>
    %140 = math.tanh %139 : vector<8x256xf32>
    %cst_36 = arith.constant 5.000000e-01 : f32
    %141 = vector.broadcast %cst_36 : f32 to vector<8x256xf32>
    %142 = arith.mulf %141, %140 : vector<8x256xf32>
    %cst_37 = arith.constant 5.000000e-01 : f32
    %143 = vector.broadcast %cst_37 : f32 to vector<8x256xf32>
    %144 = arith.addf %142, %143 : vector<8x256xf32>
    %145 = arith.select %13, %140, %144 : vector<8x256xi1>, vector<8x256xf32>
    %146 = vector.extract_strided_slice %145 {offsets = [0, 0], sizes = [8, 64], strides = [1, 1]} : vector<8x256xf32> to vector<8x64xf32>
    %147 = vector.extract_strided_slice %145 {offsets = [0, 64], sizes = [8, 64], strides = [1, 1]} : vector<8x256xf32> to vector<8x64xf32>
    %148 = vector.extract_strided_slice %145 {offsets = [0, 128], sizes = [8, 64], strides = [1, 1]} : vector<8x256xf32> to vector<8x64xf32>
    %149 = vector.extract_strided_slice %145 {offsets = [0, 192], sizes = [8, 64], strides = [1, 1]} : vector<8x256xf32> to vector<8x64xf32>
    %150 = arith.mulf %147, %133 : vector<8x64xf32>
    %151 = arith.mulf %146, %148 : vector<8x64xf32>
    %152 = arith.addf %150, %151 : vector<8x64xf32>
    %153 = math.tanh %152 : vector<8x64xf32>
    %154 = arith.mulf %149, %153 : vector<8x64xf32>
    %155 = vector.broadcast %c4_i32 : i32 to vector<8x64xi32>
    %156 = arith.muli %19, %155 : vector<8x64xi32>
    %157 = arith.cmpi slt, %156, %27 : vector<8x64xi32>
    %158 = arith.select %157, %154, %132 : vector<8x64xi1>, vector<8x64xf32>
    %159 = arith.select %157, %152, %133 : vector<8x64xi1>, vector<8x64xf32>
    %c5_i32 = arith.constant 5 : i32
    %c8_i32_38 = arith.constant 8 : i32
    %160 = arith.muli %c5_i32, %c8_i32_38 : i32
    %161 = tpu.assume_multiple %160, 8 : i32
    %162 = arith.index_cast %161 : i32 to index
    %c0_39 = arith.constant 0 : index
    %163 = vector.load %arg8[%162, %c0_39] : memref<64x256xf32, #tpu.memory_space<vmem>>, vector<8x256xf32>
    %cst_40 = arith.constant dense<0.000000e+00> : vector<8x256xf32>
    %164 = tpu.matmul %158, %7, %cst_40 {dimension_numbers = #tpu.dot_dimension_numbers<[1], [0], [0], [1], [0, 0, 1, 1], [], []>} : vector<8x64xf32>, vector<64x256xf32>, vector<8x256xf32> -> vector<8x256xf32>
    %165 = arith.addf %163, %164 : vector<8x256xf32>
    %166 = math.tanh %165 : vector<8x256xf32>
    %cst_41 = arith.constant 5.000000e-01 : f32
    %167 = vector.broadcast %cst_41 : f32 to vector<8x256xf32>
    %168 = arith.mulf %167, %166 : vector<8x256xf32>
    %cst_42 = arith.constant 5.000000e-01 : f32
    %169 = vector.broadcast %cst_42 : f32 to vector<8x256xf32>
    %170 = arith.addf %168, %169 : vector<8x256xf32>
    %171 = arith.select %13, %166, %170 : vector<8x256xi1>, vector<8x256xf32>
    %172 = vector.extract_strided_slice %171 {offsets = [0, 0], sizes = [8, 64], strides = [1, 1]} : vector<8x256xf32> to vector<8x64xf32>
    %173 = vector.extract_strided_slice %171 {offsets = [0, 64], sizes = [8, 64], strides = [1, 1]} : vector<8x256xf32> to vector<8x64xf32>
    %174 = vector.extract_strided_slice %171 {offsets = [0, 128], sizes = [8, 64], strides = [1, 1]} : vector<8x256xf32> to vector<8x64xf32>
    %175 = vector.extract_strided_slice %171 {offsets = [0, 192], sizes = [8, 64], strides = [1, 1]} : vector<8x256xf32> to vector<8x64xf32>
    %176 = arith.mulf %173, %159 : vector<8x64xf32>
    %177 = arith.mulf %172, %174 : vector<8x64xf32>
    %178 = arith.addf %176, %177 : vector<8x64xf32>
    %179 = math.tanh %178 : vector<8x64xf32>
    %180 = arith.mulf %175, %179 : vector<8x64xf32>
    %181 = vector.broadcast %c5_i32 : i32 to vector<8x64xi32>
    %182 = arith.muli %19, %181 : vector<8x64xi32>
    %183 = arith.cmpi slt, %182, %27 : vector<8x64xi32>
    %184 = arith.select %183, %180, %158 : vector<8x64xi1>, vector<8x64xf32>
    %185 = arith.select %183, %178, %159 : vector<8x64xi1>, vector<8x64xf32>
    %c6_i32 = arith.constant 6 : i32
    %c8_i32_43 = arith.constant 8 : i32
    %186 = arith.muli %c6_i32, %c8_i32_43 : i32
    %187 = tpu.assume_multiple %186, 8 : i32
    %188 = arith.index_cast %187 : i32 to index
    %c0_44 = arith.constant 0 : index
    %189 = vector.load %arg8[%188, %c0_44] : memref<64x256xf32, #tpu.memory_space<vmem>>, vector<8x256xf32>
    %cst_45 = arith.constant dense<0.000000e+00> : vector<8x256xf32>
    %190 = tpu.matmul %184, %7, %cst_45 {dimension_numbers = #tpu.dot_dimension_numbers<[1], [0], [0], [1], [0, 0, 1, 1], [], []>} : vector<8x64xf32>, vector<64x256xf32>, vector<8x256xf32> -> vector<8x256xf32>
    %191 = arith.addf %189, %190 : vector<8x256xf32>
    %192 = math.tanh %191 : vector<8x256xf32>
    %cst_46 = arith.constant 5.000000e-01 : f32
    %193 = vector.broadcast %cst_46 : f32 to vector<8x256xf32>
    %194 = arith.mulf %193, %192 : vector<8x256xf32>
    %cst_47 = arith.constant 5.000000e-01 : f32
    %195 = vector.broadcast %cst_47 : f32 to vector<8x256xf32>
    %196 = arith.addf %194, %195 : vector<8x256xf32>
    %197 = arith.select %13, %192, %196 : vector<8x256xi1>, vector<8x256xf32>
    %198 = vector.extract_strided_slice %197 {offsets = [0, 0], sizes = [8, 64], strides = [1, 1]} : vector<8x256xf32> to vector<8x64xf32>
    %199 = vector.extract_strided_slice %197 {offsets = [0, 64], sizes = [8, 64], strides = [1, 1]} : vector<8x256xf32> to vector<8x64xf32>
    %200 = vector.extract_strided_slice %197 {offsets = [0, 128], sizes = [8, 64], strides = [1, 1]} : vector<8x256xf32> to vector<8x64xf32>
    %201 = vector.extract_strided_slice %197 {offsets = [0, 192], sizes = [8, 64], strides = [1, 1]} : vector<8x256xf32> to vector<8x64xf32>
    %202 = arith.mulf %199, %185 : vector<8x64xf32>
    %203 = arith.mulf %198, %200 : vector<8x64xf32>
    %204 = arith.addf %202, %203 : vector<8x64xf32>
    %205 = math.tanh %204 : vector<8x64xf32>
    %206 = arith.mulf %201, %205 : vector<8x64xf32>
    %207 = vector.broadcast %c6_i32 : i32 to vector<8x64xi32>
    %208 = arith.muli %19, %207 : vector<8x64xi32>
    %209 = arith.cmpi slt, %208, %27 : vector<8x64xi32>
    %210 = arith.select %209, %206, %184 : vector<8x64xi1>, vector<8x64xf32>
    %211 = arith.select %209, %204, %185 : vector<8x64xi1>, vector<8x64xf32>
    %c7_i32_48 = arith.constant 7 : i32
    %c8_i32_49 = arith.constant 8 : i32
    %212 = arith.muli %c7_i32_48, %c8_i32_49 : i32
    %213 = tpu.assume_multiple %212, 8 : i32
    %214 = arith.index_cast %213 : i32 to index
    %c0_50 = arith.constant 0 : index
    %215 = vector.load %arg8[%214, %c0_50] : memref<64x256xf32, #tpu.memory_space<vmem>>, vector<8x256xf32>
    %cst_51 = arith.constant dense<0.000000e+00> : vector<8x256xf32>
    %216 = tpu.matmul %210, %7, %cst_51 {dimension_numbers = #tpu.dot_dimension_numbers<[1], [0], [0], [1], [0, 0, 1, 1], [], []>} : vector<8x64xf32>, vector<64x256xf32>, vector<8x256xf32> -> vector<8x256xf32>
    %217 = arith.addf %215, %216 : vector<8x256xf32>
    %218 = math.tanh %217 : vector<8x256xf32>
    %cst_52 = arith.constant 5.000000e-01 : f32
    %219 = vector.broadcast %cst_52 : f32 to vector<8x256xf32>
    %220 = arith.mulf %219, %218 : vector<8x256xf32>
    %cst_53 = arith.constant 5.000000e-01 : f32
    %221 = vector.broadcast %cst_53 : f32 to vector<8x256xf32>
    %222 = arith.addf %220, %221 : vector<8x256xf32>
    %223 = arith.select %13, %218, %222 : vector<8x256xi1>, vector<8x256xf32>
    %224 = vector.extract_strided_slice %223 {offsets = [0, 0], sizes = [8, 64], strides = [1, 1]} : vector<8x256xf32> to vector<8x64xf32>
    %225 = vector.extract_strided_slice %223 {offsets = [0, 64], sizes = [8, 64], strides = [1, 1]} : vector<8x256xf32> to vector<8x64xf32>
    %226 = vector.extract_strided_slice %223 {offsets = [0, 128], sizes = [8, 64], strides = [1, 1]} : vector<8x256xf32> to vector<8x64xf32>
    %227 = vector.extract_strided_slice %223 {offsets = [0, 192], sizes = [8, 64], strides = [1, 1]} : vector<8x256xf32> to vector<8x64xf32>
    %228 = arith.mulf %225, %211 : vector<8x64xf32>
    %229 = arith.mulf %224, %226 : vector<8x64xf32>
    %230 = arith.addf %228, %229 : vector<8x64xf32>
    %231 = math.tanh %230 : vector<8x64xf32>
    %232 = arith.mulf %227, %231 : vector<8x64xf32>
    %233 = vector.broadcast %c7_i32_48 : i32 to vector<8x64xi32>
    %234 = arith.muli %19, %233 : vector<8x64xi32>
    %235 = arith.cmpi slt, %234, %27 : vector<8x64xi32>
    %236 = arith.select %235, %232, %210 : vector<8x64xi1>, vector<8x64xf32>
    %237 = arith.select %235, %230, %211 : vector<8x64xi1>, vector<8x64xf32>
    %c8_i32_54 = arith.constant 8 : i32
    %c0_55 = arith.constant 0 : index
    %c0_56 = arith.constant 0 : index
    %238 = vector.load %arg5[%c0_55, %c0_56] : memref<64x128xf32, #tpu.memory_space<vmem>>, vector<64x128xf32>
    %cst_57 = arith.constant dense<0.000000e+00> : vector<8x128xf32>
    %239 = tpu.matmul %236, %238, %cst_57 {dimension_numbers = #tpu.dot_dimension_numbers<[1], [0], [0], [1], [0, 0, 1, 1], [], []>} : vector<8x64xf32>, vector<64x128xf32>, vector<8x128xf32> -> vector<8x128xf32>
    %c0_58 = arith.constant 0 : index
    %c0_59 = arith.constant 0 : index
    %240 = vector.load %arg6[%c0_58, %c0_59] : memref<1x128xf32, #tpu.memory_space<vmem>>, vector<1x128xf32>
    %241 = vector.broadcast %240 : vector<1x128xf32> to vector<8x128xf32>
    %242 = arith.addf %239, %241 : vector<8x128xf32>
    %c0_60 = arith.constant 0 : index
    %c0_61 = arith.constant 0 : index
    %243 = vector.load %arg7[%c0_60, %c0_61] : memref<8x128xf32, #tpu.memory_space<vmem>>, vector<8x128xf32>
    tpu.vector_store %arg7[%c0_60, %c0_61], %242 {strides = array<i32>} : memref<8x128xf32, #tpu.memory_space<vmem>>, vector<8x128xf32>,
    return
  }
}

</mosaic_0001>

<llo_original>
// kernel: tpu_custom_call.1
$region0: #{tpu_custom_call.1}
  #allocation0 [shape = 'u32[]', space=smem, size = 0x4, offset = 0x4, fixed_abs, tag = 'smem constant byte address 0x4 - core index']
  #allocation1 [shape = 'u32[144,128]{1,0:T(1,128)}', space=vmem, size = 0x12000, scoped, tag = 'internal scratch']
  #allocation2 [shape = 'f32[64,256]{1,0:T(8,128)}', space=vmem, size = 0x10000, scoped, tag = 'scratch operand']
  %s0 = inlined_call_operand.vmem [shape: f32[64,32], index: 0, kind: input, shape index: {}]
  %s1 = inlined_call_operand.vmem [shape: f32[32,256], index: 1, kind: input, shape index: {}]
  %s2 = inlined_call_operand.vmem [shape: f32[1,256], index: 2, kind: input, shape index: {}]
  %s3 = inlined_call_operand.hbm [shape: f32[64,256], index: 3, kind: input, shape index: {}]
  %s4 = inlined_call_operand.vmem [shape: s32[8,1], index: 4, kind: input, shape index: {}]
  %s5 = inlined_call_operand.hbm [shape: f32[64,128], index: 5, kind: input, shape index: {}]
  %s6 = inlined_call_operand.vmem [shape: f32[1,128], index: 6, kind: input, shape index: {}]
  %s7 = inlined_call_operand.hbm [shape: f32[8,128], index: 7, kind: output, shape index: {}]
  %s8 = sld [smem:[#allocation0]]
  $region46: #{tpu_custom_call.1} parent=0
    _
  %s10 = ssub.s32 1, %s8
  %s11 = scalar_select 0, %s10, %s8
  $region1: #{tpu_custom_call.1} parent=0
    #allocation3 [shape = 'u8[65536]{0}', space=vmem, size = 0x10000, scoped, tag = 'input window, operand 3, single buffered']
    #allocation4 [shape = 's32[1]{0}', space=sflag, size = 0x4, scoped, tag = 'scoped memory for tpu_custom_call.1']
    #allocation5 [shape = 's32[1]{0}', space=sflag, size = 0x4, scoped, tag = 'scoped memory for tpu_custom_call.1']
    #allocation6 [shape = 'u8[32768]{0}', space=vmem, size = 0x8000, scoped, tag = 'input window, operand 5, single buffered']
    #allocation7 [shape = 's32[1]{0}', space=sflag, size = 0x4, scoped, tag = 'scoped memory for tpu_custom_call.1']
    #allocation8 [shape = 'u8[4096]{0}', space=vmem, size = 0x1000, scoped, tag = 'output window, operand 0, single buffered']
    %12 = vsyncpa [#allocation4], 0
    %13 = vsyncpa [#allocation7], 0
    %14 = vsyncpa [#allocation5], 0
    // Predicated region
    $region2: #{tpu_custom_call.1} parent=1 // pred_check
      _
    $region3: #{tpu_custom_call.1} parent=1 // pred_check_branch
      %16 = sbr.rel (0) target = $region5
    $region4: #{tpu_custom_call.1} parent=1 // pred_region
      _
    $region5: #{tpu_custom_call.1} parent=1 // pred_fallthru
      _
    // Predicated region
    $region6: #{tpu_custom_call.1} parent=1 // pred_check
      _
    $region7: #{tpu_custom_call.1} parent=1 // pred_check_branch
      %18 = sbr.rel (0) target = $region9
    $region8: #{tpu_custom_call.1} parent=1 // pred_region
      _
    $region9: #{tpu_custom_call.1} parent=1 // pred_fallthru
      _
    // Predicated region
    $region10: #{tpu_custom_call.1} parent=1 // pred_check
      _
    $region11: #{tpu_custom_call.1} parent=1 // pred_check_branch
      %20 = sbr.rel (0) target = $region13
    $region12: #{tpu_custom_call.1} parent=1 // pred_region
      _
    $region13: #{tpu_custom_call.1} parent=1 // pred_fallthru
      _
    // Predicated region
    $region14: #{tpu_custom_call.1} parent=1 // pred_check
      _
    $region15: #{tpu_custom_call.1} parent=1 // pred_check_branch
      %22 = sbr.rel (0) target = $region17
    $region16: #{tpu_custom_call.1} parent=1 // pred_region
      %s24 = ssub.s32 2048, 2048
      %25 = vsyncadd [#allocation4], %s24
      %s26 = sshll.u32 [#allocation3], 4
      %s27 = int_to_ptr.vmem [resolvable:$true] %s26
      %32 = dma.hbm_to_vmem [thread:$0]  %s3, 2048, %s27, [#allocation4], 256, 256, 16
    $region17: #{tpu_custom_call.1} parent=1 // pred_fallthru
      _
    // Predicated region
    $region18: #{tpu_custom_call.1} parent=1 // pred_check
      _
    $region19: #{tpu_custom_call.1} parent=1 // pred_check_branch
      %34 = sbr.rel (0) target = $region21
    $region20: #{tpu_custom_call.1} parent=1 // pred_region
      _
    $region21: #{tpu_custom_call.1} parent=1 // pred_fallthru
      _
    // Predicated region
    $region22: #{tpu_custom_call.1} parent=1 // pred_check
      _
    $region23: #{tpu_custom_call.1} parent=1 // pred_check_branch
      %36 = sbr.rel (0) target = $region25
    $region24: #{tpu_custom_call.1} parent=1 // pred_region
      %s38 = ssub.s32 1024, 1024
      %39 = vsyncadd [#allocation7], %s38
      %s40 = sshll.u32 [#allocation6], 4
      %s41 = int_to_ptr.vmem [resolvable:$true] %s40
      %46 = dma.hbm_to_vmem [thread:$0]  %s5, 1024, %s41, [#allocation7], 128, 128, 8
    $region25: #{tpu_custom_call.1} parent=1 // pred_fallthru
      _
    // Predicated region
    $region26: #{tpu_custom_call.1} parent=1 // pred_check
      _
    $region27: #{tpu_custom_call.1} parent=1 // pred_check_branch
      %48 = sbr.rel (0) target = $region29
    $region28: #{tpu_custom_call.1} parent=1 // pred_region
      _
    $region29: #{tpu_custom_call.1} parent=1 // pred_fallthru
      _
    // Predicated region
    $region30: #{tpu_custom_call.1} parent=1 // pred_check
      _
    $region31: #{tpu_custom_call.1} parent=1 // pred_check_branch
      %50 = sbr.rel (0) target = $region33
    $region32: #{tpu_custom_call.1} parent=1 // pred_region
      %51 = dma.done [#allocation4], 2048
    $region33: #{tpu_custom_call.1} parent=1 // pred_fallthru
      _
    // Predicated region
    $region34: #{tpu_custom_call.1} parent=1 // pred_check
      _
    $region35: #{tpu_custom_call.1} parent=1 // pred_check_branch
      %53 = sbr.rel (0) target = $region37
    $region36: #{tpu_custom_call.1} parent=1 // pred_region
      %54 = dma.done [#allocation7], 1024
    $region37: #{tpu_custom_call.1} parent=1 // pred_fallthru
      _
    %v55 = vld [vmem:[%s0] sm:$0xff]
    %v56 = vld [vmem:[%s0 + $0x8] sm:$0xff]
    %v57 = vld [vmem:[%s0 + $0x10] sm:$0xff]
    %v58 = vld [vmem:[%s0 + $0x18] sm:$0xff]
    %v59 = vld [vmem:[%s0 + $0x20] sm:$0xff]
    %v60 = vld [vmem:[%s0 + $0x28] sm:$0xff]
    %v61 = vld [vmem:[%s0 + $0x30] sm:$0xff]
    %v62 = vld [vmem:[%s0 + $0x38] sm:$0xff]
    %v63 = vld [vmem:[%s1] sm:$0xff]
    %v64 = vld [vmem:[%s1 + $0x8] sm:$0xff]
    %v65 = vld [vmem:[%s1 + $0x10] sm:$0xff]
    %v66 = vld [vmem:[%s1 + $0x18] sm:$0xff]
    %v67 = vld [vmem:[%s1 + $0x20] sm:$0xff]
    %v68 = vld [vmem:[%s1 + $0x28] sm:$0xff]
    %v69 = vld [vmem:[%s1 + $0x30] sm:$0xff]
    %v70 = vld [vmem:[%s1 + $0x38] sm:$0xff]
    %v71 = vld [vmem:[%s2] sm:$0x3]
    %v73 = vlaneseq
    %v74 = vshrl.u32 %v73, 7
    %v75 = vsub.s32 0, %v74
    %v76 = vrot.slane %v71, %v75
    %v77 = vlaneseq
    %v78 = vshrl.u32 %v77, 7
    %v79 = vsub.s32 1, %v78
    %v80 = vrot.slane %v71, %v79
    %vm83 = vcmask 261120
    %v85 = vsel %vm83, %v55, 0
    %v88 = vsel %vm83, %v56, 0
    %v91 = vsel %vm83, %v57, 0
    %v94 = vsel %vm83, %v58, 0
    %v97 = vsel %vm83, %v59, 0
    %v100 = vsel %vm83, %v60, 0
    %v103 = vsel %vm83, %v61, 0
    %v106 = vsel %vm83, %v62, 0
    %108 = vmatprep.subr.mxu0 %v64
    %109 = vmatpush1.msra.mxu0 %v63
    %110 = vmatprep.subr.mxu0 %v66
    %111 = vmatpush1.msra.mxu0 %v65
    %112 = vmatprep.subr.mxu0 %v68
    %113 = vmatpush1.msra.mxu0 %v67
    %114 = vmatprep.subr.mxu0 %v70
    %115 = vmatpush1.msra.mxu0 %v69
    %116 = vmatprep.subr.mxu0 0.0
    %117 = vmatpush1.msra.mxu0 0.0
    %118 = vmatprep.subr.mxu0 0.0
    %119 = vmatpush1.msra.mxu0 0.0
    %120 = vmatprep.subr.mxu0 0.0
    %121 = vmatpush1.msra.mxu0 0.0
    %122 = vmatprep.subr.mxu0 0.0
    %123 = vmatpush1.msra.mxu0 0.0
    %124 = vmatprep.subr.mxu0 0.0
    %125 = vmatpush1.msra.mxu0 0.0
    %126 = vmatprep.subr.mxu0 0.0
    %127 = vmatpush1.msra.mxu0 0.0
    %128 = vmatprep.subr.mxu0 0.0
    %129 = vmatpush1.msra.mxu0 0.0
    %130 = vmatprep.subr.mxu0 0.0
    %131 = vmatpush1.msra.mxu0 0.0
    %132 = vmatprep.subr.mxu0 0.0
    %133 = vmatpush1.msra.mxu0 0.0
    %134 = vmatprep.subr.mxu0 0.0
    %135 = vmatpush1.msra.mxu0 0.0
    %136 = vmatprep.subr.mxu0 0.0
    %137 = vmatpush1.msra.mxu0 0.0
    %138 = vmatprep.subr.mxu0 0.0
    %139 = vmatpush1.msra.mxu0 0.0
    %140 = vmatprep.subr.mxu0 0.0
    %141 = vmatpush1.msra.mxu0 0.0
    %142 = vmatprep.subr.mxu0 0.0
    %143 = vmatpush1.msra.mxu0 0.0
    %144 = vmatprep.subr.mxu0 0.0
    %145 = vmatpush1.msra.mxu0 0.0
    %146 = vmatprep.subr.mxu0 0.0
    %147 = vmatpush1.msra.mxu0 0.0
    %148 = vmatprep.subr.mxu0 0.0
    %149 = vmatpush1.msra.mxu0 0.0
    %150 = vmatprep.subr.mxu0 0.0
    %151 = vmatpush1.msra.mxu0 0.0
    %152 = vmatprep.subr.mxu0 0.0
    %153 = vmatpush1.msra.mxu0 0.0
    %154 = vmatprep.subr.mxu0 0.0
    %155 = vmatpush1.msra.mxu0 0.0
    %156 = vmatprep.subr.mxu0 0.0
    %157 = vmatpush1.msra.mxu0 0.0
    %158 = vmatprep.subr.mxu0 0.0
    %159 = vmatpush1.msra.mxu0 0.0
    %160 = vmatprep.subr.mxu0 0.0
    %161 = vmatpush1.msra.mxu0 0.0
    %162 = vmatprep.subr.mxu0 0.0
    %163 = vmatpush1.msra.mxu0 0.0
    %164 = vmatprep.subr.mxu0 0.0
    %165 = vmatpush1.msra.mxu0 0.0
    %166 = vmatprep.subr.mxu0 0.0
    %167 = vmatpush1.msra.mxu0 0.0
    %168 = vmatprep.subr.mxu0 0.0
    %169 = vmatpush1.msra.mxu0 0.0
    %170 = vmatprep.subr.mxu0 0.0
    %171 = vmatpush1.msra.mxu0 0.0
    %172 = vmatprep.mubr.f32.mxu0 0.0
    %173 = vmatmul.mubr.f32.gmra.mrb[0].mxu0 %v85
    %v174 = vpop.f32.mrb[0].mxu0
    %v175 = vadd.f32 %v76, %v174
    %v176 = vpop.f32.mrb[0].mxu0
    %v177 = vadd.f32 %v80, %v176
    %178 = vmatprep.mubr.f32.mxu0 0.0
    %179 = vmatmul.mubr.f32.gmra.mrb[0].mxu0 %v88
    %v180 = vpop.f32.mrb[0].mxu0
    %v181 = vadd.f32 %v76, %v180
    %v182 = vpop.f32.mrb[0].mxu0
    %v183 = vadd.f32 %v80, %v182
    %184 = vmatprep.mubr.f32.mxu0 0.0
    %185 = vmatmul.mubr.f32.gmra.mrb[0].mxu0 %v91
    %v186 = vpop.f32.mrb[0].mxu0
    %v187 = vadd.f32 %v76, %v186
    %v188 = vpop.f32.mrb[0].mxu0
    %v189 = vadd.f32 %v80, %v188
    %190 = vmatprep.mubr.f32.mxu0 0.0
    %191 = vmatmul.mubr.f32.gmra.mrb[0].mxu0 %v94
    %v192 = vpop.f32.mrb[0].mxu0
    %v193 = vadd.f32 %v76, %v192
    %v194 = vpop.f32.mrb[0].mxu0
    %v195 = vadd.f32 %v80, %v194
    %196 = vmatprep.mubr.f32.mxu0 0.0
    %197 = vmatmul.mubr.f32.gmra.mrb[0].mxu0 %v97
    %v198 = vpop.f32.mrb[0].mxu0
    %v199 = vadd.f32 %v76, %v198
    %v200 = vpop.f32.mrb[0].mxu0
    %v201 = vadd.f32 %v80, %v200
    %202 = vmatprep.mubr.f32.mxu0 0.0
    %203 = vmatmul.mubr.f32.gmra.mrb[0].mxu0 %v100
    %v204 = vpop.f32.mrb[0].mxu0
    %v205 = vadd.f32 %v76, %v204
    %v206 = vpop.f32.mrb[0].mxu0
    %v207 = vadd.f32 %v80, %v206
    %208 = vmatprep.mubr.f32.mxu0 0.0
    %209 = vmatmul.mubr.f32.gmra.mrb[0].mxu0 %v103
    %v210 = vpop.f32.mrb[0].mxu0
    %v211 = vadd.f32 %v76, %v210
    %v212 = vpop.f32.mrb[0].mxu0
    %v213 = vadd.f32 %v80, %v212
    %214 = vmatprep.mubr.f32.mxu0 0.0
    %215 = vmatmul.mubr.f32.gmra.mrb[0].mxu0 %v106
    %v216 = vpop.f32.mrb[0].mxu0
    %v217 = vadd.f32 %v76, %v216
    %v218 = vpop.f32.mrb[0].mxu0
    %v219 = vadd.f32 %v80, %v218
    %220 = vdwg.mxu0
    %221 = vst [vmem:[#allocation2] sm:$0xff] %v175
    %222 = vst [vmem:[#allocation2 + $0x8] sm:$0xff] %v177
    %223 = vst [vmem:[#allocation2 + $0x10] sm:$0xff] %v181
    %224 = vst [vmem:[#allocation2 + $0x18] sm:$0xff] %v183
    %225 = vst [vmem:[#allocation2 + $0x20] sm:$0xff] %v187
    %226 = vst [vmem:[#allocation2 + $0x28] sm:$0xff] %v189
    %227 = vst [vmem:[#allocation2 + $0x30] sm:$0xff] %v193
    %228 = vst [vmem:[#allocation2 + $0x38] sm:$0xff] %v195
    %229 = vst [vmem:[#allocation2 + $0x40] sm:$0xff] %v199
    %230 = vst [vmem:[#allocation2 + $0x48] sm:$0xff] %v201
    %231 = vst [vmem:[#allocation2 + $0x50] sm:$0xff] %v205
    %232 = vst [vmem:[#allocation2 + $0x58] sm:$0xff] %v207
    %233 = vst [vmem:[#allocation2 + $0x60] sm:$0xff] %v211
    %234 = vst [vmem:[#allocation2 + $0x68] sm:$0xff] %v213
    %235 = vst [vmem:[#allocation2 + $0x70] sm:$0xff] %v217
    %236 = vst [vmem:[#allocation2 + $0x78] sm:$0xff] %v219
    %v237 = vld [vmem:[#allocation3] sm:$0xff]
    %v238 = vld [vmem:[#allocation3 + $0x8] sm:$0xff]
    %v239 = vld [vmem:[#allocation3 + $0x10] sm:$0xff]
    %v240 = vld [vmem:[#allocation3 + $0x18] sm:$0xff]
    %v241 = vld [vmem:[#allocation3 + $0x20] sm:$0xff]
    %v242 = vld [vmem:[#allocation3 + $0x28] sm:$0xff]
    %v243 = vld [vmem:[#allocation3 + $0x30] sm:$0xff]
    %v244 = vld [vmem:[#allocation3 + $0x38] sm:$0xff]
    %v245 = vld [vmem:[#allocation3 + $0x40] sm:$0xff]
    %v246 = vld [vmem:[#allocation3 + $0x48] sm:$0xff]
    %v247 = vld [vmem:[#allocation3 + $0x50] sm:$0xff]
    %v248 = vld [vmem:[#allocation3 + $0x58] sm:$0xff]
    %v249 = vld [vmem:[#allocation3 + $0x60] sm:$0xff]
    %v250 = vld [vmem:[#allocation3 + $0x68] sm:$0xff]
    %v251 = vld [vmem:[#allocation3 + $0x70] sm:$0xff]
    %v252 = vld [vmem:[#allocation3 + $0x78] sm:$0xff]
    %v253 = vlaneseq
    %v254 = vand.u32 %v253, 127
    %v255 = vadd.s32 %v254, 128
    %vm256 = vcmp.ge.s32.totalorder %v254, 128
    %vm257 = vcmp.ge.s32.totalorder %v255, 128
    %vm258 = vcmp.lt.s32.totalorder %v254, 192
    %vm259 = vcmp.lt.s32.totalorder %v255, 192
    %vm260 = vmand %vm256, %vm258
    %vm261 = vmand %vm257, %vm259
    %vm262 = vcmp.lt.s32.totalorder %v254, 32
    %v263 = vsel %vm262, 1, 4294967295
    %v264 = vld [vmem:[%s4] sm:$0xff]
    %v265 = vsub.s32 %v264, 7
    %266 = vset.pattern.permute.xlu0 0
    %267 = vperm.xlu0 %266, %v264
    %v268 = vpop.permute.xlu0 %267
    %269 = vset.pattern.permute.xlu0 0
    %270 = vperm.xlu0 %269, %v265
    %v271 = vpop.permute.xlu0 %270
    %v272 = vsel %vm262, %v268, %v271
    %s273 = smul.u32 0, 2
    %s274 = smul.addr %s273, 8
    %s275 = scalar_lea.vmem [#allocation2], %s274
    %v276 = vld [vmem:[%s275] sm:$0xff]
    %v277 = vld [vmem:[%s275 + $0x8] sm:$0xff]
    %vm278 = vcmask 523264
    %v280 = vsel %vm278, 0.0, 0
    %282 = vmatprep.subr.mxu0 %v238
    %283 = vmatpush1.msra.mxu0 %v237
    %284 = vmatprep.subr.mxu0 %v240
    %285 = vmatpush1.msra.mxu0 %v239
    %286 = vmatprep.subr.mxu0 %v242
    %287 = vmatpush1.msra.mxu0 %v241
    %288 = vmatprep.subr.mxu0 %v244
    %289 = vmatpush1.msra.mxu0 %v243
    %290 = vmatprep.subr.mxu0 %v246
    %291 = vmatpush1.msra.mxu0 %v245
    %292 = vmatprep.subr.mxu0 %v248
    %293 = vmatpush1.msra.mxu0 %v247
    %294 = vmatprep.subr.mxu0 %v250
    %295 = vmatpush1.msra.mxu0 %v249
    %296 = vmatprep.subr.mxu0 %v252
    %297 = vmatpush1.msra.mxu0 %v251
    %298 = vmatprep.subr.mxu0 0.0
    %299 = vmatpush1.msra.mxu0 0.0
    %300 = vmatprep.subr.mxu0 0.0
    %301 = vmatpush1.msra.mxu0 0.0
    %302 = vmatprep.subr.mxu0 0.0
    %303 = vmatpush1.msra.mxu0 0.0
    %304 = vmatprep.subr.mxu0 0.0
    %305 = vmatpush1.msra.mxu0 0.0
    %306 = vmatprep.subr.mxu0 0.0
    %307 = vmatpush1.msra.mxu0 0.0
    %308 = vmatprep.subr.mxu0 0.0
    %309 = vmatpush1.msra.mxu0 0.0
    %310 = vmatprep.subr.mxu0 0.0
    %311 = vmatpush1.msra.mxu0 0.0
    %312 = vmatprep.subr.mxu0 0.0
    %313 = vmatpush1.msra.mxu0 0.0
    %314 = vmatprep.subr.mxu0 0.0
    %315 = vmatpush1.msra.mxu0 0.0
    %316 = vmatprep.subr.mxu0 0.0
    %317 = vmatpush1.msra.mxu0 0.0
    %318 = vmatprep.subr.mxu0 0.0
    %319 = vmatpush1.msra.mxu0 0.0
    %320 = vmatprep.subr.mxu0 0.0
    %321 = vmatpush1.msra.mxu0 0.0
    %322 = vmatprep.subr.mxu0 0.0
    %323 = vmatpush1.msra.mxu0 0.0
    %324 = vmatprep.subr.mxu0 0.0
    %325 = vmatpush1.msra.mxu0 0.0
    %326 = vmatprep.subr.mxu0 0.0
    %327 = vmatpush1.msra.mxu0 0.0
    %328 = vmatprep.subr.mxu0 0.0
    %329 = vmatpush1.msra.mxu0 0.0
    %330 = vmatprep.subr.mxu0 0.0
    %331 = vmatpush1.msra.mxu0 0.0
    %332 = vmatprep.subr.mxu0 0.0
    %333 = vmatpush1.msra.mxu0 0.0
    %334 = vmatprep.subr.mxu0 0.0
    %335 = vmatpush1.msra.mxu0 0.0
    %336 = vmatprep.subr.mxu0 0.0
    %337 = vmatpush1.msra.mxu0 0.0
    %338 = vmatprep.subr.mxu0 0.0
    %339 = vmatpush1.msra.mxu0 0.0
    %340 = vmatprep.subr.mxu0 0.0
    %341 = vmatpush1.msra.mxu0 0.0
    %342 = vmatprep.subr.mxu0 0.0
    %343 = vmatpush1.msra.mxu0 0.0
    %344 = vmatprep.subr.mxu0 0.0
    %345 = vmatpush1.msra.mxu0 0.0
    %346 = vmatprep.mubr.f32.mxu0 0.0
    %347 = vmatmul.mubr.f32.gmra.mrb[0].mxu0 %v280
    %v348 = vpop.f32.mrb[0].mxu0
    %v349 = vadd.f32 0.0, %v348
    %v350 = vpop.f32.mrb[0].mxu0
    %v351 = vadd.f32 0.0, %v350
    %352 = vdwg.mxu0
    %v353 = vadd.f32 %v276, %v349
    %v354 = vadd.f32 %v277, %v351
    %v355 = vtanh.pop %v353
    %v356 = vtanh.pop %v354
    %v357 = vmul.f32 %v355, 0.5
    %v358 = vmul.f32 %v356, 0.5
    %v359 = vadd.f32 %v357, 0.5
    %v360 = vadd.f32 %v358, 0.5
    %v361 = vsel %vm260, %v355, %v359
    %v362 = vsel %vm261, %v356, %v360
    %v363 = vmul.f32 %v361, 0.0
    %v364 = vmul.f32 %v361, %v362
    %366 = vrot.lane.b32.xlu0 %v364, 64
    %v367 = vpop.permute.xlu0 %366
    %v369 = vadd.f32 %v363, %v367
    %v370 = vtanh.pop %v369
    %v371 = vmul.f32 %v362, %v370
    %vm372 = vcmp.gt.s32.totalorder %v272, 0
    %374 = vrot.lane.b32.xlu0 %v371, 64
    %v375 = vpop.permute.xlu0 %374
    %v377 = vsel %vm372, %v375, 0.0
    %379 = vrot.lane.b32.xlu0 %v369, 64
    %v380 = vpop.permute.xlu0 %379
    %v382 = vsel %vm372, %v380, 0.0
    %s383 = smul.u32 1, 2
    %s384 = smul.addr %s383, 8
    %s385 = scalar_lea.vmem [#allocation2], %s384
    %v386 = vld [vmem:[%s385] sm:$0xff]
    %v387 = vld [vmem:[%s385 + $0x8] sm:$0xff]
    %v389 = vsel %vm278, %v377, 0
    %391 = vmatprep.subr.mxu0 %v238
    %392 = vmatpush1.msra.mxu0 %v237
    %393 = vmatprep.subr.mxu0 %v240
    %394 = vmatpush1.msra.mxu0 %v239
    %395 = vmatprep.subr.mxu0 %v242
    %396 = vmatpush1.msra.mxu0 %v241
    %397 = vmatprep.subr.mxu0 %v244
    %398 = vmatpush1.msra.mxu0 %v243
    %399 = vmatprep.subr.mxu0 %v246
    %400 = vmatpush1.msra.mxu0 %v245
    %401 = vmatprep.subr.mxu0 %v248
    %402 = vmatpush1.msra.mxu0 %v247
    %403 = vmatprep.subr.mxu0 %v250
    %404 = vmatpush1.msra.mxu0 %v249
    %405 = vmatprep.subr.mxu0 %v252
    %406 = vmatpush1.msra.mxu0 %v251
    %407 = vmatprep.subr.mxu0 0.0
    %408 = vmatpush1.msra.mxu0 0.0
    %409 = vmatprep.subr.mxu0 0.0
    %410 = vmatpush1.msra.mxu0 0.0
    %411 = vmatprep.subr.mxu0 0.0
    %412 = vmatpush1.msra.mxu0 0.0
    %413 = vmatprep.subr.mxu0 0.0
    %414 = vmatpush1.msra.mxu0 0.0
    %415 = vmatprep.subr.mxu0 0.0
    %416 = vmatpush1.msra.mxu0 0.0
    %417 = vmatprep.subr.mxu0 0.0
    %418 = vmatpush1.msra.mxu0 0.0
    %419 = vmatprep.subr.mxu0 0.0
    %420 = vmatpush1.msra.mxu0 0.0
    %421 = vmatprep.subr.mxu0 0.0
    %422 = vmatpush1.msra.mxu0 0.0
    %423 = vmatprep.subr.mxu0 0.0
    %424 = vmatpush1.msra.mxu0 0.0
    %425 = vmatprep.subr.mxu0 0.0
    %426 = vmatpush1.msra.mxu0 0.0
    %427 = vmatprep.subr.mxu0 0.0
    %428 = vmatpush1.msra.mxu0 0.0
    %429 = vmatprep.subr.mxu0 0.0
    %430 = vmatpush1.msra.mxu0 0.0
    %431 = vmatprep.subr.mxu0 0.0
    %432 = vmatpush1.msra.mxu0 0.0
    %433 = vmatprep.subr.mxu0 0.0
    %434 = vmatpush1.msra.mxu0 0.0
    %435 = vmatprep.subr.mxu0 0.0
    %436 = vmatpush1.msra.mxu0 0.0
    %437 = vmatprep.subr.mxu0 0.0
    %438 = vmatpush1.msra.mxu0 0.0
    %439 = vmatprep.subr.mxu0 0.0
    %440 = vmatpush1.msra.mxu0 0.0
    %441 = vmatprep.subr.mxu0 0.0
    %442 = vmatpush1.msra.mxu0 0.0
    %443 = vmatprep.subr.mxu0 0.0
    %444 = vmatpush1.msra.mxu0 0.0
    %445 = vmatprep.subr.mxu0 0.0
    %446 = vmatpush1.msra.mxu0 0.0
    %447 = vmatprep.subr.mxu0 0.0
    %448 = vmatpush1.msra.mxu0 0.0
    %449 = vmatprep.subr.mxu0 0.0
    %450 = vmatpush1.msra.mxu0 0.0
    %451 = vmatprep.subr.mxu0 0.0
    %452 = vmatpush1.msra.mxu0 0.0
    %453 = vmatprep.subr.mxu0 0.0
    %454 = vmatpush1.msra.mxu0 0.0
    %455 = vmatprep.mubr.f32.mxu0 0.0
    %456 = vmatmul.mubr.f32.gmra.mrb[0].mxu0 %v389
    %v457 = vpop.f32.mrb[0].mxu0
    %v458 = vadd.f32 0.0, %v457
    %v459 = vpop.f32.mrb[0].mxu0
    %v460 = vadd.f32 0.0, %v459
    %461 = vdwg.mxu0
    %v462 = vadd.f32 %v386, %v458
    %v463 = vadd.f32 %v387, %v460
    %v464 = vtanh.pop %v462
    %v465 = vtanh.pop %v463
    %v466 = vmul.f32 %v464, 0.5
    %v467 = vmul.f32 %v465, 0.5
    %v468 = vadd.f32 %v466, 0.5
    %v469 = vadd.f32 %v467, 0.5
    %v470 = vsel %vm260, %v464, %v468
    %v471 = vsel %vm261, %v465, %v469
    %473 = vrot.lane.b32.xlu0 %v382, 64
    %v474 = vpop.permute.xlu0 %473
    %v476 = vmul.f32 %v470, %v474
    %v477 = vmul.f32 %v470, %v471
    %479 = vrot.lane.b32.xlu0 %v477, 64
    %v480 = vpop.permute.xlu0 %479
    %v482 = vadd.f32 %v476, %v480
    %v483 = vtanh.pop %v482
    %v484 = vmul.f32 %v471, %v483
    %vm485 = vcmp.lt.s32.totalorder %v263, %v272
    %487 = vrot.lane.b32.xlu0 %v484, 64
    %v488 = vpop.permute.xlu0 %487
    %v490 = vsel %vm485, %v488, %v377
    %492 = vrot.lane.b32.xlu0 %v482, 64
    %v493 = vpop.permute.xlu0 %492
    %v495 = vsel %vm485, %v493, %v382
    %s496 = smul.u32 2, 2
    %s497 = smul.addr %s496, 8
    %s498 = scalar_lea.vmem [#allocation2], %s497
    %v499 = vld [vmem:[%s498] sm:$0xff]
    %v500 = vld [vmem:[%s498 + $0x8] sm:$0xff]
    %v502 = vsel %vm278, %v490, 0
    %504 = vmatprep.subr.mxu0 %v238
    %505 = vmatpush1.msra.mxu0 %v237
    %506 = vmatprep.subr.mxu0 %v240
    %507 = vmatpush1.msra.mxu0 %v239
    %508 = vmatprep.subr.mxu0 %v242
    %509 = vmatpush1.msra.mxu0 %v241
    %510 = vmatprep.subr.mxu0 %v244
    %511 = vmatpush1.msra.mxu0 %v243
    %512 = vmatprep.subr.mxu0 %v246
    %513 = vmatpush1.msra.mxu0 %v245
    %514 = vmatprep.subr.mxu0 %v248
    %515 = vmatpush1.msra.mxu0 %v247
    %516 = vmatprep.subr.mxu0 %v250
    %517 = vmatpush1.msra.mxu0 %v249
    %518 = vmatprep.subr.mxu0 %v252
    %519 = vmatpush1.msra.mxu0 %v251
    %520 = vmatprep.subr.mxu0 0.0
    %521 = vmatpush1.msra.mxu0 0.0
    %522 = vmatprep.subr.mxu0 0.0
    %523 = vmatpush1.msra.mxu0 0.0
    %524 = vmatprep.subr.mxu0 0.0
    %525 = vmatpush1.msra.mxu0 0.0
    %526 = vmatprep.subr.mxu0 0.0
    %527 = vmatpush1.msra.mxu0 0.0
    %528 = vmatprep.subr.mxu0 0.0
    %529 = vmatpush1.msra.mxu0 0.0
    %530 = vmatprep.subr.mxu0 0.0
    %531 = vmatpush1.msra.mxu0 0.0
    %532 = vmatprep.subr.mxu0 0.0
    %533 = vmatpush1.msra.mxu0 0.0
    %534 = vmatprep.subr.mxu0 0.0
    %535 = vmatpush1.msra.mxu0 0.0
    %536 = vmatprep.subr.mxu0 0.0
    %537 = vmatpush1.msra.mxu0 0.0
    %538 = vmatprep.subr.mxu0 0.0
    %539 = vmatpush1.msra.mxu0 0.0
    %540 = vmatprep.subr.mxu0 0.0
    %541 = vmatpush1.msra.mxu0 0.0
    %542 = vmatprep.subr.mxu0 0.0
    %543 = vmatpush1.msra.mxu0 0.0
    %544 = vmatprep.subr.mxu0 0.0
    %545 = vmatpush1.msra.mxu0 0.0
    %546 = vmatprep.subr.mxu0 0.0
    %547 = vmatpush1.msra.mxu0 0.0
    %548 = vmatprep.subr.mxu0 0.0
    %549 = vmatpush1.msra.mxu0 0.0
    %550 = vmatprep.subr.mxu0 0.0
    %551 = vmatpush1.msra.mxu0 0.0
    %552 = vmatprep.subr.mxu0 0.0
    %553 = vmatpush1.msra.mxu0 0.0
    %554 = vmatprep.subr.mxu0 0.0
    %555 = vmatpush1.msra.mxu0 0.0
    %556 = vmatprep.subr.mxu0 0.0
    %557 = vmatpush1.msra.mxu0 0.0
    %558 = vmatprep.subr.mxu0 0.0
    %559 = vmatpush1.msra.mxu0 0.0
    %560 = vmatprep.subr.mxu0 0.0
    %561 = vmatpush1.msra.mxu0 0.0
    %562 = vmatprep.subr.mxu0 0.0
    %563 = vmatpush1.msra.mxu0 0.0
    %564 = vmatprep.subr.mxu0 0.0
    %565 = vmatpush1.msra.mxu0 0.0
    %566 = vmatprep.subr.mxu0 0.0
    %567 = vmatpush1.msra.mxu0 0.0
    %568 = vmatprep.mubr.f32.mxu0 0.0
    %569 = vmatmul.mubr.f32.gmra.mrb[0].mxu0 %v502
    %v570 = vpop.f32.mrb[0].mxu0
    %v571 = vadd.f32 0.0, %v570
    %v572 = vpop.f32.mrb[0].mxu0
    %v573 = vadd.f32 0.0, %v572
    %574 = vdwg.mxu0
    %v575 = vadd.f32 %v499, %v571
    %v576 = vadd.f32 %v500, %v573
    %v577 = vtanh.pop %v575
    %v578 = vtanh.pop %v576
    %v579 = vmul.f32 %v577, 0.5
    %v580 = vmul.f32 %v578, 0.5
    %v581 = vadd.f32 %v579, 0.5
    %v582 = vadd.f32 %v580, 0.5
    %v583 = vsel %vm260, %v577, %v581
    %v584 = vsel %vm261, %v578, %v582
    %586 = vrot.lane.b32.xlu0 %v495, 64
    %v587 = vpop.permute.xlu0 %586
    %v589 = vmul.f32 %v583, %v587
    %v590 = vmul.f32 %v583, %v584
    %592 = vrot.lane.b32.xlu0 %v590, 64
    %v593 = vpop.permute.xlu0 %592
    %v595 = vadd.f32 %v589, %v593
    %v596 = vtanh.pop %v595
    %v597 = vmul.f32 %v584, %v596
    %v598 = vmul.u32 %v263, 2
    %vm599 = vcmp.lt.s32.totalorder %v598, %v272
    %601 = vrot.lane.b32.xlu0 %v597, 64
    %v602 = vpop.permute.xlu0 %601
    %v604 = vsel %vm599, %v602, %v490
    %606 = vrot.lane.b32.xlu0 %v595, 64
    %v607 = vpop.permute.xlu0 %606
    %v609 = vsel %vm599, %v607, %v495
    %s610 = smul.u32 3, 2
    %s611 = smul.addr %s610, 8
    %s612 = scalar_lea.vmem [#allocation2], %s611
    %v613 = vld [vmem:[%s612] sm:$0xff]
    %v614 = vld [vmem:[%s612 + $0x8] sm:$0xff]
    %v616 = vsel %vm278, %v604, 0
    %618 = vmatprep.subr.mxu0 %v238
    %619 = vmatpush1.msra.mxu0 %v237
    %620 = vmatprep.subr.mxu0 %v240
    %621 = vmatpush1.msra.mxu0 %v239
    %622 = vmatprep.subr.mxu0 %v242
    %623 = vmatpush1.msra.mxu0 %v241
    %624 = vmatprep.subr.mxu0 %v244
    %625 = vmatpush1.msra.mxu0 %v243
    %626 = vmatprep.subr.mxu0 %v246
    %627 = vmatpush1.msra.mxu0 %v245
    %628 = vmatprep.subr.mxu0 %v248
    %629 = vmatpush1.msra.mxu0 %v247
    %630 = vmatprep.subr.mxu0 %v250
    %631 = vmatpush1.msra.mxu0 %v249
    %632 = vmatprep.subr.mxu0 %v252
    %633 = vmatpush1.msra.mxu0 %v251
    %634 = vmatprep.subr.mxu0 0.0
    %635 = vmatpush1.msra.mxu0 0.0
    %636 = vmatprep.subr.mxu0 0.0
    %637 = vmatpush1.msra.mxu0 0.0
    %638 = vmatprep.subr.mxu0 0.0
    %639 = vmatpush1.msra.mxu0 0.0
    %640 = vmatprep.subr.mxu0 0.0
    %641 = vmatpush1.msra.mxu0 0.0
    %642 = vmatprep.subr.mxu0 0.0
    %643 = vmatpush1.msra.mxu0 0.0
    %644 = vmatprep.subr.mxu0 0.0
    %645 = vmatpush1.msra.mxu0 0.0
    %646 = vmatprep.subr.mxu0 0.0
    %647 = vmatpush1.msra.mxu0 0.0
    %648 = vmatprep.subr.mxu0 0.0
    %649 = vmatpush1.msra.mxu0 0.0
    %650 = vmatprep.subr.mxu0 0.0
    %651 = vmatpush1.msra.mxu0 0.0
    %652 = vmatprep.subr.mxu0 0.0
    %653 = vmatpush1.msra.mxu0 0.0
    %654 = vmatprep.subr.mxu0 0.0
    %655 = vmatpush1.msra.mxu0 0.0
    %656 = vmatprep.subr.mxu0 0.0
    %657 = vmatpush1.msra.mxu0 0.0
    %658 = vmatprep.subr.mxu0 0.0
    %659 = vmatpush1.msra.mxu0 0.0
    %660 = vmatprep.subr.mxu0 0.0
    %661 = vmatpush1.msra.mxu0 0.0
    %662 = vmatprep.subr.mxu0 0.0
    %663 = vmatpush1.msra.mxu0 0.0
    %664 = vmatprep.subr.mxu0 0.0
    %665 = vmatpush1.msra.mxu0 0.0
    %666 = vmatprep.subr.mxu0 0.0
    %667 = vmatpush1.msra.mxu0 0.0
    %668 = vmatprep.subr.mxu0 0.0
    %669 = vmatpush1.msra.mxu0 0.0
    %670 = vmatprep.subr.mxu0 0.0
    %671 = vmatpush1.msra.mxu0 0.0
    %672 = vmatprep.subr.mxu0 0.0
    %673 = vmatpush1.msra.mxu0 0.0
    %674 = vmatprep.subr.mxu0 0.0
    %675 = vmatpush1.msra.mxu0 0.0
    %676 = vmatprep.subr.mxu0 0.0
    %677 = vmatpush1.msra.mxu0 0.0
    %678 = vmatprep.subr.mxu0 0.0
    %679 = vmatpush1.msra.mxu0 0.0
    %680 = vmatprep.subr.mxu0 0.0
    %681 = vmatpush1.msra.mxu0 0.0
    %682 = vmatprep.mubr.f32.mxu0 0.0
    %683 = vmatmul.mubr.f32.gmra.mrb[0].mxu0 %v616
    %v684 = vpop.f32.mrb[0].mxu0
    %v685 = vadd.f32 0.0, %v684
    %v686 = vpop.f32.mrb[0].mxu0
    %v687 = vadd.f32 0.0, %v686
    %688 = vdwg.mxu0
    %v689 = vadd.f32 %v613, %v685
    %v690 = vadd.f32 %v614, %v687
    %v691 = vtanh.pop %v689
    %v692 = vtanh.pop %v690
    %v693 = vmul.f32 %v691, 0.5
    %v694 = vmul.f32 %v692, 0.5
    %v695 = vadd.f32 %v693, 0.5
    %v696 = vadd.f32 %v694, 0.5
    %v697 = vsel %vm260, %v691, %v695
    %v698 = vsel %vm261, %v692, %v696
    %700 = vrot.lane.b32.xlu0 %v609, 64
    %v701 = vpop.permute.xlu0 %700
    %v703 = vmul.f32 %v697, %v701
    %v704 = vmul.f32 %v697, %v698
    %706 = vrot.lane.b32.xlu0 %v704, 64
    %v707 = vpop.permute.xlu0 %706
    %v709 = vadd.f32 %v703, %v707
    %v710 = vtanh.pop %v709
    %v711 = vmul.f32 %v698, %v710
    %v712 = vmul.u32 %v263, 3
    %vm713 = vcmp.lt.s32.totalorder %v712, %v272
    %715 = vrot.lane.b32.xlu0 %v711, 64
    %v716 = vpop.permute.xlu0 %715
    %v718 = vsel %vm713, %v716, %v604
    %720 = vrot.lane.b32.xlu0 %v709, 64
    %v721 = vpop.permute.xlu0 %720
    %v723 = vsel %vm713, %v721, %v609
    %s724 = smul.u32 4, 2
    %s725 = smul.addr %s724, 8
    %s726 = scalar_lea.vmem [#allocation2], %s725
    %v727 = vld [vmem:[%s726] sm:$0xff]
    %v728 = vld [vmem:[%s726 + $0x8] sm:$0xff]
    %v730 = vsel %vm278, %v718, 0
    %732 = vmatprep.subr.mxu0 %v238
    %733 = vmatpush1.msra.mxu0 %v237
    %734 = vmatprep.subr.mxu0 %v240
    %735 = vmatpush1.msra.mxu0 %v239
    %736 = vmatprep.subr.mxu0 %v242
    %737 = vmatpush1.msra.mxu0 %v241
    %738 = vmatprep.subr.mxu0 %v244
    %739 = vmatpush1.msra.mxu0 %v243
    %740 = vmatprep.subr.mxu0 %v246
    %741 = vmatpush1.msra.mxu0 %v245
    %742 = vmatprep.subr.mxu0 %v248
    %743 = vmatpush1.msra.mxu0 %v247
    %744 = vmatprep.subr.mxu0 %v250
    %745 = vmatpush1.msra.mxu0 %v249
    %746 = vmatprep.subr.mxu0 %v252
    %747 = vmatpush1.msra.mxu0 %v251
    %748 = vmatprep.subr.mxu0 0.0
    %749 = vmatpush1.msra.mxu0 0.0
    %750 = vmatprep.subr.mxu0 0.0
    %751 = vmatpush1.msra.mxu0 0.0
    %752 = vmatprep.subr.mxu0 0.0
    %753 = vmatpush1.msra.mxu0 0.0
    %754 = vmatprep.subr.mxu0 0.0
    %755 = vmatpush1.msra.mxu0 0.0
    %756 = vmatprep.subr.mxu0 0.0
    %757 = vmatpush1.msra.mxu0 0.0
    %758 = vmatprep.subr.mxu0 0.0
    %759 = vmatpush1.msra.mxu0 0.0
    %760 = vmatprep.subr.mxu0 0.0
    %761 = vmatpush1.msra.mxu0 0.0
    %762 = vmatprep.subr.mxu0 0.0
    %763 = vmatpush1.msra.mxu0 0.0
    %764 = vmatprep.subr.mxu0 0.0
    %765 = vmatpush1.msra.mxu0 0.0
    %766 = vmatprep.subr.mxu0 0.0
    %767 = vmatpush1.msra.mxu0 0.0
    %768 = vmatprep.subr.mxu0 0.0
    %769 = vmatpush1.msra.mxu0 0.0
    %770 = vmatprep.subr.mxu0 0.0
    %771 = vmatpush1.msra.mxu0 0.0
    %772 = vmatprep.subr.mxu0 0.0
    %773 = vmatpush1.msra.mxu0 0.0
    %774 = vmatprep.subr.mxu0 0.0
    %775 = vmatpush1.msra.mxu0 0.0
    %776 = vmatprep.subr.mxu0 0.0
    %777 = vmatpush1.msra.mxu0 0.0
    %778 = vmatprep.subr.mxu0 0.0
    %779 = vmatpush1.msra.mxu0 0.0
    %780 = vmatprep.subr.mxu0 0.0
    %781 = vmatpush1.msra.mxu0 0.0
    %782 = vmatprep.subr.mxu0 0.0
    %783 = vmatpush1.msra.mxu0 0.0
    %784 = vmatprep.subr.mxu0 0.0
    %785 = vmatpush1.msra.mxu0 0.0
    %786 = vmatprep.subr.mxu0 0.0
    %787 = vmatpush1.msra.mxu0 0.0
    %788 = vmatprep.subr.mxu0 0.0
    %789 = vmatpush1.msra.mxu0 0.0
    %790 = vmatprep.subr.mxu0 0.0
    %791 = vmatpush1.msra.mxu0 0.0
    %792 = vmatprep.subr.mxu0 0.0
    %793 = vmatpush1.msra.mxu0 0.0
    %794 = vmatprep.subr.mxu0 0.0
    %795 = vmatpush1.msra.mxu0 0.0
    %796 = vmatprep.mubr.f32.mxu0 0.0
    %797 = vmatmul.mubr.f32.gmra.mrb[0].mxu0 %v730
    %v798 = vpop.f32.mrb[0].mxu0
    %v799 = vadd.f32 0.0, %v798
    %v800 = vpop.f32.mrb[0].mxu0
    %v801 = vadd.f32 0.0, %v800
    %802 = vdwg.mxu0
    %v803 = vadd.f32 %v727, %v799
    %v804 = vadd.f32 %v728, %v801
    %v805 = vtanh.pop %v803
    %v806 = vtanh.pop %v804
    %v807 = vmul.f32 %v805, 0.5
    %v808 = vmul.f32 %v806, 0.5
    %v809 = vadd.f32 %v807, 0.5
    %v810 = vadd.f32 %v808, 0.5
    %v811 = vsel %vm260, %v805, %v809
    %v812 = vsel %vm261, %v806, %v810
    %814 = vrot.lane.b32.xlu0 %v723, 64
    %v815 = vpop.permute.xlu0 %814
    %v817 = vmul.f32 %v811, %v815
    %v818 = vmul.f32 %v811, %v812
    %820 = vrot.lane.b32.xlu0 %v818, 64
    %v821 = vpop.permute.xlu0 %820
    %v823 = vadd.f32 %v817, %v821
    %v824 = vtanh.pop %v823
    %v825 = vmul.f32 %v812, %v824
    %v826 = vmul.u32 %v263, 4
    %vm827 = vcmp.lt.s32.totalorder %v826, %v272
    %829 = vrot.lane.b32.xlu0 %v825, 64
    %v830 = vpop.permute.xlu0 %829
    %v832 = vsel %vm827, %v830, %v718
    %834 = vrot.lane.b32.xlu0 %v823, 64
    %v835 = vpop.permute.xlu0 %834
    %v837 = vsel %vm827, %v835, %v723
    %s838 = smul.u32 5, 2
    %s839 = smul.addr %s838, 8
    %s840 = scalar_lea.vmem [#allocation2], %s839
    %v841 = vld [vmem:[%s840] sm:$0xff]
    %v842 = vld [vmem:[%s840 + $0x8] sm:$0xff]
    %v844 = vsel %vm278, %v832, 0
    %846 = vmatprep.subr.mxu0 %v238
    %847 = vmatpush1.msra.mxu0 %v237
    %848 = vmatprep.subr.mxu0 %v240
    %849 = vmatpush1.msra.mxu0 %v239
    %850 = vmatprep.subr.mxu0 %v242
    %851 = vmatpush1.msra.mxu0 %v241
    %852 = vmatprep.subr.mxu0 %v244
    %853 = vmatpush1.msra.mxu0 %v243
    %854 = vmatprep.subr.mxu0 %v246
    %855 = vmatpush1.msra.mxu0 %v245
    %856 = vmatprep.subr.mxu0 %v248
    %857 = vmatpush1.msra.mxu0 %v247
    %858 = vmatprep.subr.mxu0 %v250
    %859 = vmatpush1.msra.mxu0 %v249
    %860 = vmatprep.subr.mxu0 %v252
    %861 = vmatpush1.msra.mxu0 %v251
    %862 = vmatprep.subr.mxu0 0.0
    %863 = vmatpush1.msra.mxu0 0.0
    %864 = vmatprep.subr.mxu0 0.0
    %865 = vmatpush1.msra.mxu0 0.0
    %866 = vmatprep.subr.mxu0 0.0
    %867 = vmatpush1.msra.mxu0 0.0
    %868 = vmatprep.subr.mxu0 0.0
    %869 = vmatpush1.msra.mxu0 0.0
    %870 = vmatprep.subr.mxu0 0.0
    %871 = vmatpush1.msra.mxu0 0.0
    %872 = vmatprep.subr.mxu0 0.0
    %873 = vmatpush1.msra.mxu0 0.0
    %874 = vmatprep.subr.mxu0 0.0
    %875 = vmatpush1.msra.mxu0 0.0
    %876 = vmatprep.subr.mxu0 0.0
    %877 = vmatpush1.msra.mxu0 0.0
    %878 = vmatprep.subr.mxu0 0.0
    %879 = vmatpush1.msra.mxu0 0.0
    %880 = vmatprep.subr.mxu0 0.0
    %881 = vmatpush1.msra.mxu0 0.0
    %882 = vmatprep.subr.mxu0 0.0
    %883 = vmatpush1.msra.mxu0 0.0
    %884 = vmatprep.subr.mxu0 0.0
    %885 = vmatpush1.msra.mxu0 0.0
    %886 = vmatprep.subr.mxu0 0.0
    %887 = vmatpush1.msra.mxu0 0.0
    %888 = vmatprep.subr.mxu0 0.0
    %889 = vmatpush1.msra.mxu0 0.0
    %890 = vmatprep.subr.mxu0 0.0
    %891 = vmatpush1.msra.mxu0 0.0
    %892 = vmatprep.subr.mxu0 0.0
    %893 = vmatpush1.msra.mxu0 0.0
    %894 = vmatprep.subr.mxu0 0.0
    %895 = vmatpush1.msra.mxu0 0.0
    %896 = vmatprep.subr.mxu0 0.0
    %897 = vmatpush1.msra.mxu0 0.0
    %898 = vmatprep.subr.mxu0 0.0
    %899 = vmatpush1.msra.mxu0 0.0
    %900 = vmatprep.subr.mxu0 0.0
    %901 = vmatpush1.msra.mxu0 0.0
    %902 = vmatprep.subr.mxu0 0.0
    %903 = vmatpush1.msra.mxu0 0.0
    %904 = vmatprep.subr.mxu0 0.0
    %905 = vmatpush1.msra.mxu0 0.0
    %906 = vmatprep.subr.mxu0 0.0
    %907 = vmatpush1.msra.mxu0 0.0
    %908 = vmatprep.subr.mxu0 0.0
    %909 = vmatpush1.msra.mxu0 0.0
    %910 = vmatprep.mubr.f32.mxu0 0.0
    %911 = vmatmul.mubr.f32.gmra.mrb[0].mxu0 %v844
    %v912 = vpop.f32.mrb[0].mxu0
    %v913 = vadd.f32 0.0, %v912
    %v914 = vpop.f32.mrb[0].mxu0
    %v915 = vadd.f32 0.0, %v914
    %916 = vdwg.mxu0
    %v917 = vadd.f32 %v841, %v913
    %v918 = vadd.f32 %v842, %v915
    %v919 = vtanh.pop %v917
    %v920 = vtanh.pop %v918
    %v921 = vmul.f32 %v919, 0.5
    %v922 = vmul.f32 %v920, 0.5
    %v923 = vadd.f32 %v921, 0.5
    %v924 = vadd.f32 %v922, 0.5
    %v925 = vsel %vm260, %v919, %v923
    %v926 = vsel %vm261, %v920, %v924
    %928 = vrot.lane.b32.xlu0 %v837, 64
    %v929 = vpop.permute.xlu0 %928
    %v931 = vmul.f32 %v925, %v929
    %v932 = vmul.f32 %v925, %v926
    %934 = vrot.lane.b32.xlu0 %v932, 64
    %v935 = vpop.permute.xlu0 %934
    %v937 = vadd.f32 %v931, %v935
    %v938 = vtanh.pop %v937
    %v939 = vmul.f32 %v926, %v938
    %v940 = vmul.u32 %v263, 5
    %vm941 = vcmp.lt.s32.totalorder %v940, %v272
    %943 = vrot.lane.b32.xlu0 %v939, 64
    %v944 = vpop.permute.xlu0 %943
    %v946 = vsel %vm941, %v944, %v832
    %948 = vrot.lane.b32.xlu0 %v937, 64
    %v949 = vpop.permute.xlu0 %948
    %v951 = vsel %vm941, %v949, %v837
    %s952 = smul.u32 6, 2
    %s953 = smul.addr %s952, 8
    %s954 = scalar_lea.vmem [#allocation2], %s953
    %v955 = vld [vmem:[%s954] sm:$0xff]
    %v956 = vld [vmem:[%s954 + $0x8] sm:$0xff]
    %v958 = vsel %vm278, %v946, 0
    %960 = vmatprep.subr.mxu0 %v238
    %961 = vmatpush1.msra.mxu0 %v237
    %962 = vmatprep.subr.mxu0 %v240
    %963 = vmatpush1.msra.mxu0 %v239
    %964 = vmatprep.subr.mxu0 %v242
    %965 = vmatpush1.msra.mxu0 %v241
    %966 = vmatprep.subr.mxu0 %v244
    %967 = vmatpush1.msra.mxu0 %v243
    %968 = vmatprep.subr.mxu0 %v246
    %969 = vmatpush1.msra.mxu0 %v245
    %970 = vmatprep.subr.mxu0 %v248
    %971 = vmatpush1.msra.mxu0 %v247
    %972 = vmatprep.subr.mxu0 %v250
    %973 = vmatpush1.msra.mxu0 %v249
    %974 = vmatprep.subr.mxu0 %v252
    %975 = vmatpush1.msra.mxu0 %v251
    %976 = vmatprep.subr.mxu0 0.0
    %977 = vmatpush1.msra.mxu0 0.0
    %978 = vmatprep.subr.mxu0 0.0
    %979 = vmatpush1.msra.mxu0 0.0
    %980 = vmatprep.subr.mxu0 0.0
    %981 = vmatpush1.msra.mxu0 0.0
    %982 = vmatprep.subr.mxu0 0.0
    %983 = vmatpush1.msra.mxu0 0.0
    %984 = vmatprep.subr.mxu0 0.0
    %985 = vmatpush1.msra.mxu0 0.0
    %986 = vmatprep.subr.mxu0 0.0
    %987 = vmatpush1.msra.mxu0 0.0
    %988 = vmatprep.subr.mxu0 0.0
    %989 = vmatpush1.msra.mxu0 0.0
    %990 = vmatprep.subr.mxu0 0.0
    %991 = vmatpush1.msra.mxu0 0.0
    %992 = vmatprep.subr.mxu0 0.0
    %993 = vmatpush1.msra.mxu0 0.0
    %994 = vmatprep.subr.mxu0 0.0
    %995 = vmatpush1.msra.mxu0 0.0
    %996 = vmatprep.subr.mxu0 0.0
    %997 = vmatpush1.msra.mxu0 0.0
    %998 = vmatprep.subr.mxu0 0.0
    %999 = vmatpush1.msra.mxu0 0.0
    %1000 = vmatprep.subr.mxu0 0.0
    %1001 = vmatpush1.msra.mxu0 0.0
    %1002 = vmatprep.subr.mxu0 0.0
    %1003 = vmatpush1.msra.mxu0 0.0
    %1004 = vmatprep.subr.mxu0 0.0
    %1005 = vmatpush1.msra.mxu0 0.0
    %1006 = vmatprep.subr.mxu0 0.0
    %1007 = vmatpush1.msra.mxu0 0.0
    %1008 = vmatprep.subr.mxu0 0.0
    %1009 = vmatpush1.msra.mxu0 0.0
    %1010 = vmatprep.subr.mxu0 0.0
    %1011 = vmatpush1.msra.mxu0 0.0
    %1012 = vmatprep.subr.mxu0 0.0
    %1013 = vmatpush1.msra.mxu0 0.0
    %1014 = vmatprep.subr.mxu0 0.0
    %1015 = vmatpush1.msra.mxu0 0.0
    %1016 = vmatprep.subr.mxu0 0.0
    %1017 = vmatpush1.msra.mxu0 0.0
    %1018 = vmatprep.subr.mxu0 0.0
    %1019 = vmatpush1.msra.mxu0 0.0
    %1020 = vmatprep.subr.mxu0 0.0
    %1021 = vmatpush1.msra.mxu0 0.0
    %1022 = vmatprep.subr.mxu0 0.0
    %1023 = vmatpush1.msra.mxu0 0.0
    %1024 = vmatprep.mubr.f32.mxu0 0.0
    %1025 = vmatmul.mubr.f32.gmra.mrb[0].mxu0 %v958
    %v1026 = vpop.f32.mrb[0].mxu0
    %v1027 = vadd.f32 0.0, %v1026
    %v1028 = vpop.f32.mrb[0].mxu0
    %v1029 = vadd.f32 0.0, %v1028
    %1030 = vdwg.mxu0
    %v1031 = vadd.f32 %v955, %v1027
    %v1032 = vadd.f32 %v956, %v1029
    %v1033 = vtanh.pop %v1031
    %v1034 = vtanh.pop %v1032
    %v1035 = vmul.f32 %v1033, 0.5
    %v1036 = vmul.f32 %v1034, 0.5
    %v1037 = vadd.f32 %v1035, 0.5
    %v1038 = vadd.f32 %v1036, 0.5
    %v1039 = vsel %vm260, %v1033, %v1037
    %v1040 = vsel %vm261, %v1034, %v1038
    %1042 = vrot.lane.b32.xlu0 %v951, 64
    %v1043 = vpop.permute.xlu0 %1042
    %v1045 = vmul.f32 %v1039, %v1043
    %v1046 = vmul.f32 %v1039, %v1040
    %1048 = vrot.lane.b32.xlu0 %v1046, 64
    %v1049 = vpop.permute.xlu0 %1048
    %v1051 = vadd.f32 %v1045, %v1049
    %v1052 = vtanh.pop %v1051
    %v1053 = vmul.f32 %v1040, %v1052
    %v1054 = vmul.u32 %v263, 6
    %vm1055 = vcmp.lt.s32.totalorder %v1054, %v272
    %1057 = vrot.lane.b32.xlu0 %v1053, 64
    %v1058 = vpop.permute.xlu0 %1057
    %v1060 = vsel %vm1055, %v1058, %v946
    %1062 = vrot.lane.b32.xlu0 %v1051, 64
    %v1063 = vpop.permute.xlu0 %1062
    %v1065 = vsel %vm1055, %v1063, %v951
    %s1066 = smul.u32 7, 2
    %s1067 = smul.addr %s1066, 8
    %s1068 = scalar_lea.vmem [#allocation2], %s1067
    %v1069 = vld [vmem:[%s1068] sm:$0xff]
    %v1070 = vld [vmem:[%s1068 + $0x8] sm:$0xff]
    %v1072 = vsel %vm278, %v1060, 0
    %1074 = vmatprep.subr.mxu0 %v238
    %1075 = vmatpush1.msra.mxu0 %v237
    %1076 = vmatprep.subr.mxu0 %v240
    %1077 = vmatpush1.msra.mxu0 %v239
    %1078 = vmatprep.subr.mxu0 %v242
    %1079 = vmatpush1.msra.mxu0 %v241
    %1080 = vmatprep.subr.mxu0 %v244
    %1081 = vmatpush1.msra.mxu0 %v243
    %1082 = vmatprep.subr.mxu0 %v246
    %1083 = vmatpush1.msra.mxu0 %v245
    %1084 = vmatprep.subr.mxu0 %v248
    %1085 = vmatpush1.msra.mxu0 %v247
    %1086 = vmatprep.subr.mxu0 %v250
    %1087 = vmatpush1.msra.mxu0 %v249
    %1088 = vmatprep.subr.mxu0 %v252
    %1089 = vmatpush1.msra.mxu0 %v251
    %1090 = vmatprep.subr.mxu0 0.0
    %1091 = vmatpush1.msra.mxu0 0.0
    %1092 = vmatprep.subr.mxu0 0.0
    %1093 = vmatpush1.msra.mxu0 0.0
    %1094 = vmatprep.subr.mxu0 0.0
    %1095 = vmatpush1.msra.mxu0 0.0
    %1096 = vmatprep.subr.mxu0 0.0
    %1097 = vmatpush1.msra.mxu0 0.0
    %1098 = vmatprep.subr.mxu0 0.0
    %1099 = vmatpush1.msra.mxu0 0.0
    %1100 = vmatprep.subr.mxu0 0.0
    %1101 = vmatpush1.msra.mxu0 0.0
    %1102 = vmatprep.subr.mxu0 0.0
    %1103 = vmatpush1.msra.mxu0 0.0
    %1104 = vmatprep.subr.mxu0 0.0
    %1105 = vmatpush1.msra.mxu0 0.0
    %1106 = vmatprep.subr.mxu0 0.0
    %1107 = vmatpush1.msra.mxu0 0.0
    %1108 = vmatprep.subr.mxu0 0.0
    %1109 = vmatpush1.msra.mxu0 0.0
    %1110 = vmatprep.subr.mxu0 0.0
    %1111 = vmatpush1.msra.mxu0 0.0
    %1112 = vmatprep.subr.mxu0 0.0
    %1113 = vmatpush1.msra.mxu0 0.0
    %1114 = vmatprep.subr.mxu0 0.0
    %1115 = vmatpush1.msra.mxu0 0.0
    %1116 = vmatprep.subr.mxu0 0.0
    %1117 = vmatpush1.msra.mxu0 0.0
    %1118 = vmatprep.subr.mxu0 0.0
    %1119 = vmatpush1.msra.mxu0 0.0
    %1120 = vmatprep.subr.mxu0 0.0
    %1121 = vmatpush1.msra.mxu0 0.0
    %1122 = vmatprep.subr.mxu0 0.0
    %1123 = vmatpush1.msra.mxu0 0.0
    %1124 = vmatprep.subr.mxu0 0.0
    %1125 = vmatpush1.msra.mxu0 0.0
    %1126 = vmatprep.subr.mxu0 0.0
    %1127 = vmatpush1.msra.mxu0 0.0
    %1128 = vmatprep.subr.mxu0 0.0
    %1129 = vmatpush1.msra.mxu0 0.0
    %1130 = vmatprep.subr.mxu0 0.0
    %1131 = vmatpush1.msra.mxu0 0.0
    %1132 = vmatprep.subr.mxu0 0.0
    %1133 = vmatpush1.msra.mxu0 0.0
    %1134 = vmatprep.subr.mxu0 0.0
    %1135 = vmatpush1.msra.mxu0 0.0
    %1136 = vmatprep.subr.mxu0 0.0
    %1137 = vmatpush1.msra.mxu0 0.0
    %1138 = vmatprep.mubr.f32.mxu0 0.0
    %1139 = vmatmul.mubr.f32.gmra.mrb[0].mxu0 %v1072
    %v1140 = vpop.f32.mrb[0].mxu0
    %v1141 = vadd.f32 0.0, %v1140
    %v1142 = vpop.f32.mrb[0].mxu0
    %v1143 = vadd.f32 0.0, %v1142
    %1144 = vdwg.mxu0
    %v1145 = vadd.f32 %v1069, %v1141
    %v1146 = vadd.f32 %v1070, %v1143
    %v1147 = vtanh.pop %v1145
    %v1148 = vtanh.pop %v1146
    %v1149 = vmul.f32 %v1147, 0.5
    %v1150 = vmul.f32 %v1148, 0.5
    %v1151 = vadd.f32 %v1149, 0.5
    %v1152 = vadd.f32 %v1150, 0.5
    %v1153 = vsel %vm260, %v1147, %v1151
    %v1154 = vsel %vm261, %v1148, %v1152
    %1156 = vrot.lane.b32.xlu0 %v1065, 64
    %v1157 = vpop.permute.xlu0 %1156
    %v1159 = vmul.f32 %v1153, %v1157
    %v1160 = vmul.f32 %v1153, %v1154
    %1162 = vrot.lane.b32.xlu0 %v1160, 64
    %v1163 = vpop.permute.xlu0 %1162
    %v1165 = vadd.f32 %v1159, %v1163
    %v1166 = vtanh.pop %v1165
    %v1167 = vmul.f32 %v1154, %v1166
    %v1168 = vmul.u32 %v263, 7
    %vm1169 = vcmp.lt.s32.totalorder %v1168, %v272
    %1171 = vrot.lane.b32.xlu0 %v1167, 64
    %v1172 = vpop.permute.xlu0 %1171
    %v1174 = vsel %vm1169, %v1172, %v1060
    %v1175 = vld [vmem:[#allocation6] sm:$0xff]
    %v1176 = vld [vmem:[#allocation6 + $0x8] sm:$0xff]
    %v1177 = vld [vmem:[#allocation6 + $0x10] sm:$0xff]
    %v1178 = vld [vmem:[#allocation6 + $0x18] sm:$0xff]
    %v1179 = vld [vmem:[#allocation6 + $0x20] sm:$0xff]
    %v1180 = vld [vmem:[#allocation6 + $0x28] sm:$0xff]
    %v1181 = vld [vmem:[#allocation6 + $0x30] sm:$0xff]
    %v1182 = vld [vmem:[#allocation6 + $0x38] sm:$0xff]
    %v1183 = vld [vmem:[%s6] sm:$0x1]
    %v1185 = vlaneseq
    %v1186 = vshrl.u32 %v1185, 7
    %v1187 = vsub.s32 0, %v1186
    %v1188 = vrot.slane %v1183, %v1187
    %v1191 = vsel %vm278, %v1174, 0
    %1193 = vmatprep.subr.mxu0 0.0
    %1194 = vmatpush1.msra.mxu0 %v1175
    %1195 = vmatprep.subr.mxu0 0.0
    %1196 = vmatpush1.msra.mxu0 %v1176
    %1197 = vmatprep.subr.mxu0 0.0
    %1198 = vmatpush1.msra.mxu0 %v1177
    %1199 = vmatprep.subr.mxu0 0.0
    %1200 = vmatpush1.msra.mxu0 %v1178
    %1201 = vmatprep.subr.mxu0 0.0
    %1202 = vmatpush1.msra.mxu0 %v1179
    %1203 = vmatprep.subr.mxu0 0.0
    %1204 = vmatpush1.msra.mxu0 %v1180
    %1205 = vmatprep.subr.mxu0 0.0
    %1206 = vmatpush1.msra.mxu0 %v1181
    %1207 = vmatprep.subr.mxu0 0.0
    %1208 = vmatpush1.msra.mxu0 %v1182
    %1209 = vmatprep.subr.mxu0 0.0
    %1210 = vmatpush1.msra.mxu0 0.0
    %1211 = vmatprep.subr.mxu0 0.0
    %1212 = vmatpush1.msra.mxu0 0.0
    %1213 = vmatprep.subr.mxu0 0.0
    %1214 = vmatpush1.msra.mxu0 0.0
    %1215 = vmatprep.subr.mxu0 0.0
    %1216 = vmatpush1.msra.mxu0 0.0
    %1217 = vmatprep.subr.mxu0 0.0
    %1218 = vmatpush1.msra.mxu0 0.0
    %1219 = vmatprep.subr.mxu0 0.0
    %1220 = vmatpush1.msra.mxu0 0.0
    %1221 = vmatprep.subr.mxu0 0.0
    %1222 = vmatpush1.msra.mxu0 0.0
    %1223 = vmatprep.subr.mxu0 0.0
    %1224 = vmatpush1.msra.mxu0 0.0
    %1225 = vmatprep.subr.mxu0 0.0
    %1226 = vmatpush1.msra.mxu0 0.0
    %1227 = vmatprep.subr.mxu0 0.0
    %1228 = vmatpush1.msra.mxu0 0.0
    %1229 = vmatprep.subr.mxu0 0.0
    %1230 = vmatpush1.msra.mxu0 0.0
    %1231 = vmatprep.subr.mxu0 0.0
    %1232 = vmatpush1.msra.mxu0 0.0
    %1233 = vmatprep.subr.mxu0 0.0
    %1234 = vmatpush1.msra.mxu0 0.0
    %1235 = vmatprep.subr.mxu0 0.0
    %1236 = vmatpush1.msra.mxu0 0.0
    %1237 = vmatprep.subr.mxu0 0.0
    %1238 = vmatpush1.msra.mxu0 0.0
    %1239 = vmatprep.subr.mxu0 0.0
    %1240 = vmatpush1.msra.mxu0 0.0
    %1241 = vmatprep.subr.mxu0 0.0
    %1242 = vmatpush1.msra.mxu0 0.0
    %1243 = vmatprep.subr.mxu0 0.0
    %1244 = vmatpush1.msra.mxu0 0.0
    %1245 = vmatprep.subr.mxu0 0.0
    %1246 = vmatpush1.msra.mxu0 0.0
    %1247 = vmatprep.subr.mxu0 0.0
    %1248 = vmatpush1.msra.mxu0 0.0
    %1249 = vmatprep.subr.mxu0 0.0
    %1250 = vmatpush1.msra.mxu0 0.0
    %1251 = vmatprep.subr.mxu0 0.0
    %1252 = vmatpush1.msra.mxu0 0.0
    %1253 = vmatprep.subr.mxu0 0.0
    %1254 = vmatpush1.msra.mxu0 0.0
    %1255 = vmatprep.subr.mxu0 0.0
    %1256 = vmatpush1.msra.mxu0 0.0
    %1257 = vmatprep.mubr.f32.mxu0 0.0
    %1258 = vmatmul.mubr.f32.gmra.mrb[0].mxu0 %v1191
    %v1259 = vpop.f32.mrb[0].mxu0
    %v1260 = vadd.f32 %v1188, %v1259
    %v1261 = vpop.f32.mrb[0].mxu0
    %1262 = vdwg.mxu0
    %1263 = vst [vmem:[#allocation8] sm:$0xff] %v1260
    // Predicated region
    $region38: #{tpu_custom_call.1} parent=1 // pred_check
      _
    $region39: #{tpu_custom_call.1} parent=1 // pred_check_branch
      %1265 = sbr.rel (0) target = $region41
    $region40: #{tpu_custom_call.1} parent=1 // pred_region
      %s1267 = ssub.s32 128, 128
      %1268 = vsyncadd [#allocation5], %s1267
      %s1270 = sshll.u32 [#allocation8], 4
      %s1271 = int_to_ptr.vmem [resolvable:$true] %s1270
      %1273 = dma.vmem_to_hbm [thread:$0]  %s1271, 128, %s7, [#allocation5]
    $region41: #{tpu_custom_call.1} parent=1 // pred_fallthru
      _
    // Predicated region
    $region42: #{tpu_custom_call.1} parent=1 // pred_check
      _
    $region43: #{tpu_custom_call.1} parent=1 // pred_check_branch
      %1275 = sbr.rel (0) target = $region45
    $region44: #{tpu_custom_call.1} parent=1 // pred_region
      %1276 = dma.done [#allocation5], 128
    $region45: #{tpu_custom_call.1} parent=1 // pred_fallthru
      _
    %1277 = vsyncpa [#allocation4], 1
    %1278 = vsyncpa [#allocation7], 1
    %1279 = vsyncpa [#allocation5], 1

</llo_original>
